<compile_context>
chip_gen: v5e
topology: v5e:2x2
jax: 0.10.0
libtpu: 0.0.40
codegen_flags: <defaults>
</compile_context>

<pallas_src>
import functools
import math

import jax
import jax.numpy as jnp
from jax.experimental import pallas as pl
from jax.experimental.pallas import tpu as pltpu


def mha_kernel(*refs, num_heads: int, head_dim: int, has_mask: bool):
    """One batch tile per grid step; flat projections + head-batched attention."""
    if has_mask:
        (q_ref, k_ref, v_ref, mask_ref,
         wq_ref, bq_ref, wk_ref, bk_ref, wv_ref, bv_ref,
         wo_ref, bo_ref, o_ref) = refs
    else:
        (q_ref, k_ref, v_ref,
         wq_ref, bq_ref, wk_ref, bk_ref, wv_ref, bv_ref,
         wo_ref, bo_ref, o_ref) = refs
        mask_ref = None

    nh, hd = num_heads, head_dim
    bt, sq, hidden = q_ref.shape          # (batch_tile, Sq, H)
    sk = k_ref.shape[1]

    def project(x_ref, w_ref, b_ref):
        # Flat matmul: MXU sees (rows, H) @ (H, H); activations touched once.
        b_, s_, _ = x_ref.shape
        x = x_ref[...].reshape(b_ * s_, hidden)                       # bf16
        y = jnp.dot(x, w_ref[...], preferred_element_type=jnp.float32)
        y = y + b_ref[...]                                            # f32 bias
        # Single relayout: split heads out of the lane dim, batch over them.
        y = y.reshape(b_, s_, nh, hd)
        y = jnp.transpose(y, (0, 2, 1, 3)).reshape(b_ * nh, s_, hd)
        return y

    q_h = project(q_ref, wq_ref, bq_ref)   # (bt*nh, Sq, hd); scale pre-folded in Wq/bq
    k_h = project(k_ref, wk_ref, bk_ref)   # (bt*nh, Sk, hd)
    v_h = project(v_ref, wv_ref, bv_ref)   # (bt*nh, Sk, hd)

    # Scaled dot-product attention, batched over (batch_tile, head).
    s = jnp.einsum('bqd,bkd->bqk',
                   q_h.astype(jnp.bfloat16), k_h.astype(jnp.bfloat16),
                   preferred_element_type=jnp.float32)                # (bt*nh, Sq, Sk)
    if mask_ref is not None:
        s = s + mask_ref[...][None]          # additive bias: 0 keep / -1e30 masked

    m_max = jnp.max(s, axis=-1, keepdims=True)
    p = jnp.exp(s - m_max)
    denom = jnp.sum(p, axis=-1, keepdims=True)
    p = p * pl.reciprocal(denom, approx=True)                         # softmax, f32
    # TODO(synk): attention/output dropout in training mode not implemented.

    ctx = jnp.einsum('bqk,bkd->bqd',
                     p.astype(jnp.bfloat16), v_h.astype(jnp.bfloat16),
                     preferred_element_type=jnp.float32)              # (bt*nh, Sq, hd)

    # Merge heads back into the lane dim; one flat output projection (the MXU
    # accumulator performs the reduction over heads -- no f32 (nh, rows, H)
    # intermediate, no jnp.sum over heads).
    ctx = ctx.reshape(bt, nh, sq, hd)
    ctx = jnp.transpose(ctx, (0, 2, 1, 3)).reshape(bt * sq, hidden)
    out = jnp.dot(ctx.astype(jnp.bfloat16), wo_ref[...],
                  preferred_element_type=jnp.float32) + bo_ref[...]
    o_ref[...] = out.reshape(bt, sq, hidden).astype(o_ref.dtype)


def multi_head_attention(q, k, v, params, *, num_heads: int,
                         mask=None, batch_tile: int = 1):
    """Eval-mode forward. q: (B, Sq, H), k/v: (B, Sk, H) -> (B, Sq, H).

    batch_tile: batch elements per grid step (default 1 -> B parallel steps;
    keep >= 2 steps so both v7x TensorCores are used and DMA pipelines).
    """
    B, Sq, H = q.shape
    _, Sk, _ = k.shape
    assert H % num_heads == 0
    hd = H // num_heads
    assert B % batch_tile == 0
    n_tiles = B // batch_tile

    wq, bq, wk, bk, wv, bv, wo, bo = params   # weights (in, out) layout; biases (1, H)
    cdt = jnp.bfloat16
    scale = hd ** (-0.5)

    # Activations / weights bf16 at the boundary, biases f32. Scale folded into Wq/bq.
    q3, k3, v3 = q.astype(cdt), k.astype(cdt), v.astype(cdt)
    wq_s = (wq * scale).astype(cdt)
    bq_s = (bq * scale).reshape(1, H).astype(jnp.float32)
    wk_c, bk_c = wk.astype(cdt), bk.reshape(1, H).astype(jnp.float32)
    wv_c, bv_c = wv.astype(cdt), bv.reshape(1, H).astype(jnp.float32)
    wo_c, bo_c = wo.astype(cdt), bo.reshape(1, H).astype(jnp.float32)

    has_mask = mask is not None
    act_q = pl.BlockSpec((batch_tile, Sq, H), lambda i: (i, 0, 0))
    act_kv = pl.BlockSpec((batch_tile, Sk, H), lambda i: (i, 0, 0))
    inputs = [q3, k3, v3]
    in_specs = [act_q, act_kv, act_kv]
    if has_mask:
        # PyTorch convention: mask == 0 -> -inf. A finite -1e30 is used so a
        # fully-masked row gives a uniform distribution instead of NaN.
        assert mask.shape == (Sq, Sk), "TODO(synk): 3-D per-batch masks unsupported"
        bias = jnp.where(mask != 0, 0.0, -1e30).astype(jnp.float32)
        inputs.append(bias)
        in_specs.append(pl.BlockSpec((Sq, Sk), lambda i: (0, 0)))

    w_spec = pl.BlockSpec((H, H), lambda i: (0, 0))
    b_spec = pl.BlockSpec((1, H), lambda i: (0, 0))
    inputs += [wq_s, bq_s, wk_c, bk_c, wv_c, bv_c, wo_c, bo_c]
    in_specs += [w_spec, b_spec, w_spec, b_spec, w_spec, b_spec, w_spec, b_spec]

    kernel = functools.partial(mha_kernel, num_heads=num_heads,
                               head_dim=hd, has_mask=has_mask)

    out = pl.pallas_call(
        kernel,
        out_shape=jax.ShapeDtypeStruct((B, Sq, H), q.dtype),
        grid_spec=pltpu.PrefetchScalarGridSpec(
            num_scalar_prefetch=0,
            grid=(n_tiles,),
            in_specs=in_specs,
            out_specs=pl.BlockSpec((batch_tile, Sq, H), lambda i: (i, 0, 0)),
        ),
        compiler_params=pltpu.CompilerParams(
            dimension_semantics=("parallel",),
            # Explicit scoped-VMEM budget: above the v5e (16 MiB) / v6e (32 MiB)
            # defaults, comfortably under v7x's 64 MiB physical VMEM.
            vmem_limit_bytes=48 * 1024 * 1024,
        ),
    )(*inputs)
    return out


def reference_mha(q, k, v, params, *, num_heads: int, mask=None):
    """Pure-JAX f32 reference mirroring the PyTorch forward (eval mode)."""
    B, Sq, H = q.shape
    Sk = k.shape[1]
    hd = H // num_heads
    scale = hd ** (-0.5)
    wq, bq, wk, bk, wv, bv, wo, bo = params
    Q = (q @ wq + bq).reshape(B, Sq, num_heads, hd).transpose(0, 2, 1, 3)
    K = (k @ wk + bk).reshape(B, Sk, num_heads, hd).transpose(0, 2, 1, 3)
    V = (v @ wv + bv).reshape(B, Sk, num_heads, hd).transpose(0, 2, 1, 3)
    scores = jnp.einsum('bhqd,bhkd->bhqk', Q, K) * scale
    if mask is not None:
        scores = jnp.where(mask[None, None] != 0, scores, -jnp.inf)
    attn = jax.nn.softmax(scores, axis=-1)
    ctx = jnp.einsum('bhqk,bhkd->bhqd', attn, V)
    ctx = ctx.transpose(0, 2, 1, 3).reshape(B, Sq, H)
    return ctx @ wo + bo


if __name__ == "__main__":
    batch, seq_len, hidden_dim, num_heads = 2, 8, 32, 4

    key = jax.random.PRNGKey(0)
    keys = jax.random.split(key, 11)

    def linear_params(kw, kb, fan_in):
        bound = 1.0 / math.sqrt(fan_in)
        w = jax.random.uniform(kw, (hidden_dim, hidden_dim), jnp.float32, -bound, bound)
        b = jax.random.uniform(kb, (1, hidden_dim), jnp.float32, -bound, bound)
        return w, b  # weight stored pre-transposed as (in, out)

    wq, bq = linear_params(keys[0], keys[1], hidden_dim)
    wk, bk = linear_params(keys[2], keys[3], hidden_dim)
    wv, bv = linear_params(keys[4], keys[5], hidden_dim)
    wo, bo = linear_params(keys[6], keys[7], hidden_dim)
    params = (wq, bq, wk, bk, wv, bv, wo, bo)

    q = jax.random.normal(keys[8], (batch, seq_len, hidden_dim), jnp.float32)
    k = jax.random.normal(keys[9], (batch, seq_len, hidden_dim), jnp.float32)
    v = jax.random.normal(keys[10], (batch, seq_len, hidden_dim), jnp.float32)

    # Unmasked path.
    out = multi_head_attention(q, k, v, params, num_heads=num_heads)
    out = jax.block_until_ready(out)
    ref = reference_mha(q, k, v, params, num_heads=num_heads)
    assert out.shape == (batch, seq_len, hidden_dim)
    # bf16 matmul operands + approx reciprocal => tolerance looser than pure f32.
    assert jnp.allclose(out, ref, atol=3e-2, rtol=3e-2), "mismatch vs reference (no mask)"

    # Masked path (2-D causal mask, PyTorch convention: 0 == masked position).
    causal = jnp.tril(jnp.ones((seq_len, seq_len), jnp.int32))
    out_m = multi_head_attention(q, k, v, params, num_heads=num_heads, mask=causal)
    out_m = jax.block_until_ready(out_m)
    ref_m = reference_mha(q, k, v, params, num_heads=num_heads, mask=causal)
    assert jnp.allclose(out_m, ref_m, atol=3e-2, rtol=3e-2), "mismatch vs reference (masked)"

    print("KERNEL_OK")
</pallas_src>

<mosaic_0001>
module attributes {stable_mosaic.version = 11 : i64} {
  func.func @mha_kernel(%arg0: i32, %arg1: memref<1x8x32xbf16, #tpu.memory_space<vmem>>, %arg2: memref<1x8x32xbf16, #tpu.memory_space<vmem>>, %arg3: memref<1x8x32xbf16, #tpu.memory_space<vmem>>, %arg4: memref<32x32xbf16, #tpu.memory_space<vmem>>, %arg5: memref<1x32xf32, #tpu.memory_space<vmem>>, %arg6: memref<32x32xbf16, #tpu.memory_space<vmem>>, %arg7: memref<1x32xf32, #tpu.memory_space<vmem>>, %arg8: memref<32x32xbf16, #tpu.memory_space<vmem>>, %arg9: memref<1x32xf32, #tpu.memory_space<vmem>>, %arg10: memref<32x32xbf16, #tpu.memory_space<vmem>>, %arg11: memref<1x32xf32, #tpu.memory_space<vmem>>, %arg12: memref<1x8x32xf32, #tpu.memory_space<vmem>>) attributes {dimension_semantics = [#tpu.dimension_semantics<parallel>], iteration_bounds = array<i64: 2>, scalar_prefetch = 0 : i64, scratch_operands = 0 : i64, tpu.core_type = #tpu.core_type<tc>, window_params = [{transform_indices = @transform_0, window_bounds = array<i64: 1, 8, 32>}, {transform_indices = @transform_1, window_bounds = array<i64: 1, 8, 32>}, {transform_indices = @transform_2, window_bounds = array<i64: 1, 8, 32>}, {pipeline_mode = #tpu.pipeline_mode<synchronous>, transform_indices = @transform_3, window_bounds = array<i64: 32, 32>}, {pipeline_mode = #tpu.pipeline_mode<synchronous>, transform_indices = @transform_4, window_bounds = array<i64: 1, 32>}, {pipeline_mode = #tpu.pipeline_mode<synchronous>, transform_indices = @transform_5, window_bounds = array<i64: 32, 32>}, {pipeline_mode = #tpu.pipeline_mode<synchronous>, transform_indices = @transform_6, window_bounds = array<i64: 1, 32>}, {pipeline_mode = #tpu.pipeline_mode<synchronous>, transform_indices = @transform_7, window_bounds = array<i64: 32, 32>}, {pipeline_mode = #tpu.pipeline_mode<synchronous>, transform_indices = @transform_8, window_bounds = array<i64: 1, 32>}, {pipeline_mode = #tpu.pipeline_mode<synchronous>, transform_indices = @transform_9, window_bounds = array<i64: 32, 32>}, {pipeline_mode = #tpu.pipeline_mode<synchronous>, transform_indices = @transform_10, window_bounds = array<i64: 1, 32>}, {transform_indices = @transform_11, window_bounds = array<i64: 1, 8, 32>}]} {
    %c0 = arith.constant 0 : index
    %c0_0 = arith.constant 0 : index
    %c0_1 = arith.constant 0 : index
    %0 = vector.load %arg1[%c0, %c0_0, %c0_1] : memref<1x8x32xbf16, #tpu.memory_space<vmem>>, vector<1x8x32xbf16>
    %1 = vector.shape_cast %0 : vector<1x8x32xbf16> to vector<8x32xbf16>
    %c0_2 = arith.constant 0 : index
    %c0_3 = arith.constant 0 : index
    %2 = vector.load %arg4[%c0_2, %c0_3] : memref<32x32xbf16, #tpu.memory_space<vmem>>, vector<32x32xbf16>
    %cst = arith.constant dense<0.000000e+00> : vector<8x32xf32>
    %3 = tpu.matmul %1, %2, %cst {dimension_numbers = #tpu.dot_dimension_numbers<[1], [0], [0], [1], [0, 0, 1, 1], [], []>} : vector<8x32xbf16>, vector<32x32xbf16>, vector<8x32xf32> -> vector<8x32xf32>
    %c0_4 = arith.constant 0 : index
    %c0_5 = arith.constant 0 : index
    %4 = vector.load %arg5[%c0_4, %c0_5] : memref<1x32xf32, #tpu.memory_space<vmem>>, vector<1x32xf32>
    %5 = vector.broadcast %4 : vector<1x32xf32> to vector<8x32xf32>
    %6 = arith.addf %3, %5 : vector<8x32xf32>
    %7 = vector.shape_cast %6 : vector<8x32xf32> to vector<1x8x4x8xf32>
    %8 = tpu.transpose %7, [0, 2, 1, 3] : vector<1x8x4x8xf32> -> vector<1x4x8x8xf32>
    %9 = vector.shape_cast %8 : vector<1x4x8x8xf32> to vector<4x8x8xf32>
    %c0_6 = arith.constant 0 : index
    %c0_7 = arith.constant 0 : index
    %c0_8 = arith.constant 0 : index
    %10 = vector.load %arg2[%c0_6, %c0_7, %c0_8] : memref<1x8x32xbf16, #tpu.memory_space<vmem>>, vector<1x8x32xbf16>
    %11 = vector.shape_cast %10 : vector<1x8x32xbf16> to vector<8x32xbf16>
    %c0_9 = arith.constant 0 : index
    %c0_10 = arith.constant 0 : index
    %12 = vector.load %arg6[%c0_9, %c0_10] : memref<32x32xbf16, #tpu.memory_space<vmem>>, vector<32x32xbf16>
    %cst_11 = arith.constant dense<0.000000e+00> : vector<8x32xf32>
    %13 = tpu.matmul %11, %12, %cst_11 {dimension_numbers = #tpu.dot_dimension_numbers<[1], [0], [0], [1], [0, 0, 1, 1], [], []>} : vector<8x32xbf16>, vector<32x32xbf16>, vector<8x32xf32> -> vector<8x32xf32>
    %c0_12 = arith.constant 0 : index
    %c0_13 = arith.constant 0 : index
    %14 = vector.load %arg7[%c0_12, %c0_13] : memref<1x32xf32, #tpu.memory_space<vmem>>, vector<1x32xf32>
    %15 = vector.broadcast %14 : vector<1x32xf32> to vector<8x32xf32>
    %16 = arith.addf %13, %15 : vector<8x32xf32>
    %17 = vector.shape_cast %16 : vector<8x32xf32> to vector<1x8x4x8xf32>
    %18 = tpu.transpose %17, [0, 2, 1, 3] : vector<1x8x4x8xf32> -> vector<1x4x8x8xf32>
    %19 = vector.shape_cast %18 : vector<1x4x8x8xf32> to vector<4x8x8xf32>
    %c0_14 = arith.constant 0 : index
    %c0_15 = arith.constant 0 : index
    %c0_16 = arith.constant 0 : index
    %20 = vector.load %arg3[%c0_14, %c0_15, %c0_16] : memref<1x8x32xbf16, #tpu.memory_space<vmem>>, vector<1x8x32xbf16>
    %21 = vector.shape_cast %20 : vector<1x8x32xbf16> to vector<8x32xbf16>
    %c0_17 = arith.constant 0 : index
    %c0_18 = arith.constant 0 : index
    %22 = vector.load %arg8[%c0_17, %c0_18] : memref<32x32xbf16, #tpu.memory_space<vmem>>, vector<32x32xbf16>
    %cst_19 = arith.constant dense<0.000000e+00> : vector<8x32xf32>
    %23 = tpu.matmul %21, %22, %cst_19 {dimension_numbers = #tpu.dot_dimension_numbers<[1], [0], [0], [1], [0, 0, 1, 1], [], []>} : vector<8x32xbf16>, vector<32x32xbf16>, vector<8x32xf32> -> vector<8x32xf32>
    %c0_20 = arith.constant 0 : index
    %c0_21 = arith.constant 0 : index
    %24 = vector.load %arg9[%c0_20, %c0_21] : memref<1x32xf32, #tpu.memory_space<vmem>>, vector<1x32xf32>
    %25 = vector.broadcast %24 : vector<1x32xf32> to vector<8x32xf32>
    %26 = arith.addf %23, %25 : vector<8x32xf32>
    %27 = vector.shape_cast %26 : vector<8x32xf32> to vector<1x8x4x8xf32>
    %28 = tpu.transpose %27, [0, 2, 1, 3] : vector<1x8x4x8xf32> -> vector<1x4x8x8xf32>
    %29 = vector.shape_cast %28 : vector<1x4x8x8xf32> to vector<4x8x8xf32>
    %30 = arith.truncf %9 : vector<4x8x8xf32> to vector<4x8x8xbf16>
    %31 = arith.truncf %19 : vector<4x8x8xf32> to vector<4x8x8xbf16>
    "tpu.trace_start"() <{level = 10 : i32, message = "bqd,bkd->bqk"}> : () -> ()
    %cst_22 = arith.constant dense<0.000000e+00> : vector<4x8x8xf32>
    %32 = tpu.matmul %30, %31, %cst_22 {dimension_numbers = #tpu.dot_dimension_numbers<[2], [2], [1], [1], [0, 0, 0, 1, 1, 1], [0], [0]>} : vector<4x8x8xbf16>, vector<4x8x8xbf16>, vector<4x8x8xf32> -> vector<4x8x8xf32>
    "tpu.trace_stop"() : () -> ()
    %cst_23 = arith.constant dense<0xFF800000> : vector<4x8xf32>
    %33 = vector.multi_reduction <maximumf>, %32, %cst_23 [2] : vector<4x8x8xf32> to vector<4x8xf32>
    %34 = vector.shape_cast %33 : vector<4x8xf32> to vector<4x8x1xf32>
    %35 = vector.broadcast %34 : vector<4x8x1xf32> to vector<4x8x8xf32>
    %36 = arith.subf %32, %35 : vector<4x8x8xf32>
    %37 = math.exp %36 : vector<4x8x8xf32>
    %cst_24 = arith.constant dense<0.000000e+00> : vector<4x8xf32>
    %38 = vector.multi_reduction <add>, %37, %cst_24 [2] : vector<4x8x8xf32> to vector<4x8xf32>
    %39 = vector.shape_cast %38 : vector<4x8xf32> to vector<4x8x1xf32>
    %40 = tpu.reciprocal %39 {approx = true} : vector<4x8x1xf32> -> vector<4x8x1xf32>
    %41 = vector.broadcast %40 : vector<4x8x1xf32> to vector<4x8x8xf32>
    %42 = arith.mulf %37, %41 : vector<4x8x8xf32>
    %43 = arith.truncf %42 : vector<4x8x8xf32> to vector<4x8x8xbf16>
    %44 = arith.truncf %29 : vector<4x8x8xf32> to vector<4x8x8xbf16>
    "tpu.trace_start"() <{level = 10 : i32, message = "bqk,bkd->bqd"}> : () -> ()
    %cst_25 = arith.constant dense<0.000000e+00> : vector<4x8x8xf32>
    %45 = tpu.matmul %43, %44, %cst_25 {dimension_numbers = #tpu.dot_dimension_numbers<[2], [1], [1], [2], [0, 0, 0, 1, 1, 2], [0], [0]>} : vector<4x8x8xbf16>, vector<4x8x8xbf16>, vector<4x8x8xf32> -> vector<4x8x8xf32>
    "tpu.trace_stop"() : () -> ()
    %46 = vector.shape_cast %45 : vector<4x8x8xf32> to vector<1x4x8x8xf32>
    %47 = tpu.transpose %46, [0, 2, 1, 3] : vector<1x4x8x8xf32> -> vector<1x8x4x8xf32>
    %48 = vector.shape_cast %47 : vector<1x8x4x8xf32> to vector<8x32xf32>
    %49 = arith.truncf %48 : vector<8x32xf32> to vector<8x32xbf16>
    %c0_26 = arith.constant 0 : index
    %c0_27 = arith.constant 0 : index
    %50 = vector.load %arg10[%c0_26, %c0_27] : memref<32x32xbf16, #tpu.memory_space<vmem>>, vector<32x32xbf16>
    %cst_28 = arith.constant dense<0.000000e+00> : vector<8x32xf32>
    %51 = tpu.matmul %49, %50, %cst_28 {dimension_numbers = #tpu.dot_dimension_numbers<[1], [0], [0], [1], [0, 0, 1, 1], [], []>} : vector<8x32xbf16>, vector<32x32xbf16>, vector<8x32xf32> -> vector<8x32xf32>
    %c0_29 = arith.constant 0 : index
    %c0_30 = arith.constant 0 : index
    %52 = vector.load %arg11[%c0_29, %c0_30] : memref<1x32xf32, #tpu.memory_space<vmem>>, vector<1x32xf32>
    %53 = vector.broadcast %52 : vector<1x32xf32> to vector<8x32xf32>
    %54 = arith.addf %51, %53 : vector<8x32xf32>
    %55 = vector.shape_cast %54 : vector<8x32xf32> to vector<1x8x32xf32>
    %c0_31 = arith.constant 0 : index
    %c0_32 = arith.constant 0 : index
    %c0_33 = arith.constant 0 : index
    %56 = vector.load %arg12[%c0_31, %c0_32, %c0_33] : memref<1x8x32xf32, #tpu.memory_space<vmem>>, vector<1x8x32xf32>
    tpu.vector_store %arg12[%c0_31, %c0_32, %c0_33], %55 {strides = array<i32>} : memref<1x8x32xf32, #tpu.memory_space<vmem>>, vector<1x8x32xf32>,
    return
  }
  func.func @transform_0(%arg0: i32) -> (i32, i32, i32) {
    %c0_i32 = arith.constant 0 : i32
    %c0_i32_0 = arith.constant 0 : i32
    %c0_i32_1 = arith.constant 0 : i32
    return %arg0, %c0_i32, %c0_i32_0 : i32, i32, i32
  }
  func.func @transform_1(%arg0: i32) -> (i32, i32, i32) {
    %c0_i32 = arith.constant 0 : i32
    %c0_i32_0 = arith.constant 0 : i32
    %c0_i32_1 = arith.constant 0 : i32
    return %arg0, %c0_i32, %c0_i32_0 : i32, i32, i32
  }
  func.func @transform_2(%arg0: i32) -> (i32, i32, i32) {
    %c0_i32 = arith.constant 0 : i32
    %c0_i32_0 = arith.constant 0 : i32
    %c0_i32_1 = arith.constant 0 : i32
    return %arg0, %c0_i32, %c0_i32_0 : i32, i32, i32
  }
  func.func @transform_3(%arg0: i32) -> (i32, i32) {
    %c0_i32 = arith.constant 0 : i32
    %c0_i32_0 = arith.constant 0 : i32
    %c0_i32_1 = arith.constant 0 : i32
    return %c0_i32, %c0_i32_0 : i32, i32
  }
  func.func @transform_4(%arg0: i32) -> (i32, i32) {
    %c0_i32 = arith.constant 0 : i32
    %c0_i32_0 = arith.constant 0 : i32
    %c0_i32_1 = arith.constant 0 : i32
    return %c0_i32, %c0_i32_0 : i32, i32
  }
  func.func @transform_5(%arg0: i32) -> (i32, i32) {
    %c0_i32 = arith.constant 0 : i32
    %c0_i32_0 = arith.constant 0 : i32
    %c0_i32_1 = arith.constant 0 : i32
    return %c0_i32, %c0_i32_0 : i32, i32
  }
  func.func @transform_6(%arg0: i32) -> (i32, i32) {
    %c0_i32 = arith.constant 0 : i32
    %c0_i32_0 = arith.constant 0 : i32
    %c0_i32_1 = arith.constant 0 : i32
    return %c0_i32, %c0_i32_0 : i32, i32
  }
  func.func @transform_7(%arg0: i32) -> (i32, i32) {
    %c0_i32 = arith.constant 0 : i32
    %c0_i32_0 = arith.constant 0 : i32
    %c0_i32_1 = arith.constant 0 : i32
    return %c0_i32, %c0_i32_0 : i32, i32
  }
  func.func @transform_8(%arg0: i32) -> (i32, i32) {
    %c0_i32 = arith.constant 0 : i32
    %c0_i32_0 = arith.constant 0 : i32
    %c0_i32_1 = arith.constant 0 : i32
    return %c0_i32, %c0_i32_0 : i32, i32
  }
  func.func @transform_9(%arg0: i32) -> (i32, i32) {
    %c0_i32 = arith.constant 0 : i32
    %c0_i32_0 = arith.constant 0 : i32
    %c0_i32_1 = arith.constant 0 : i32
    return %c0_i32, %c0_i32_0 : i32, i32
  }
  func.func @transform_10(%arg0: i32) -> (i32, i32) {
    %c0_i32 = arith.constant 0 : i32
    %c0_i32_0 = arith.constant 0 : i32
    %c0_i32_1 = arith.constant 0 : i32
    return %c0_i32, %c0_i32_0 : i32, i32
  }
  func.func @transform_11(%arg0: i32) -> (i32, i32, i32) {
    %c0_i32 = arith.constant 0 : i32
    %c0_i32_0 = arith.constant 0 : i32
    %c0_i32_1 = arith.constant 0 : i32
    return %arg0, %c0_i32, %c0_i32_0 : i32, i32, i32
  }
}

</mosaic_0001>

<llo_original>
// kernel: tpu_custom_call.1
$region0: #{tpu_custom_call.1}
  #allocation0 [shape = 'u32[]', space=smem, size = 0x4, offset = 0x4, fixed_abs, tag = 'smem constant byte address 0x4 - core index']
  #allocation1 [shape = 'u32[72,128]{1,0:T(1,128)}', space=vmem, size = 0x9000, scoped, tag = 'internal scratch']
  %s0 = inlined_call_operand.hbm [shape: bf16[2,8,32], index: 0, kind: input, shape index: {}]
  %s1 = inlined_call_operand.hbm [shape: bf16[2,8,32], index: 1, kind: input, shape index: {}]
  %s2 = inlined_call_operand.hbm [shape: bf16[2,8,32], index: 2, kind: input, shape index: {}]
  %s3 = inlined_call_operand.hbm [shape: bf16[32,32], index: 3, kind: input, shape index: {}]
  %s4 = inlined_call_operand.vmem [shape: f32[1,32], index: 4, kind: input, shape index: {}]
  %s5 = inlined_call_operand.hbm [shape: bf16[32,32], index: 5, kind: input, shape index: {}]
  %s6 = inlined_call_operand.vmem [shape: f32[1,32], index: 6, kind: input, shape index: {}]
  %s7 = inlined_call_operand.hbm [shape: bf16[32,32], index: 7, kind: input, shape index: {}]
  %s8 = inlined_call_operand.vmem [shape: f32[1,32], index: 8, kind: input, shape index: {}]
  %s9 = inlined_call_operand.hbm [shape: bf16[32,32], index: 9, kind: input, shape index: {}]
  %s10 = inlined_call_operand.vmem [shape: f32[1,32], index: 10, kind: input, shape index: {}]
  %s11 = inlined_call_operand.hbm [shape: f32[2,8,32], index: 11, kind: output, shape index: {}]
  %s12 = sld [smem:[#allocation0]]
  $region105: #{tpu_custom_call.1} parent=0
    _
  %s14 = ssub.s32 1, %s12
  %s15 = scalar_select 0, %s14, %s12
  $region1: #{tpu_custom_call.1} parent=0
    #allocation2 [shape = 'u8[4096]{0}', space=vmem, size = 0x1000, scoped, tag = 'input window, operand 0']
    #allocation3 [shape = 's32[2]{0}', space=sflag, size = 0x8, scoped, tag = 'scoped memory for tpu_custom_call.1']
    #allocation4 [shape = 's32[2]{0}', space=sflag, size = 0x8, scoped, tag = 'scoped memory for tpu_custom_call.1']
    #allocation5 [shape = 'u8[4096]{0}', space=vmem, size = 0x1000, scoped, tag = 'input window, operand 1']
    #allocation6 [shape = 's32[2]{0}', space=sflag, size = 0x8, scoped, tag = 'scoped memory for tpu_custom_call.1']
    #allocation7 [shape = 'u8[4096]{0}', space=vmem, size = 0x1000, scoped, tag = 'input window, operand 2']
    #allocation8 [shape = 'u8[8192]{0}', space=vmem, size = 0x2000, scoped, tag = 'input window, operand 3, single buffered']
    #allocation9 [shape = 's32[1]{0}', space=sflag, size = 0x4, scoped, tag = 'scoped memory for tpu_custom_call.1']
    #allocation10 [shape = 'u8[8192]{0}', space=vmem, size = 0x2000, scoped, tag = 'input window, operand 5, single buffered']
    #allocation11 [shape = 'u8[8192]{0}', space=vmem, size = 0x2000, scoped, tag = 'input window, operand 7, single buffered']
    #allocation12 [shape = 's32[1]{0}', space=sflag, size = 0x4, scoped, tag = 'scoped memory for tpu_custom_call.1']
    #allocation13 [shape = 'u8[8192]{0}', space=vmem, size = 0x2000, scoped, tag = 'input window, operand 9, single buffered']
    #allocation14 [shape = 'u8[8192]{0}', space=vmem, size = 0x2000, scoped, tag = 'output window, operand 0']
    %16 = vsyncpa [#allocation3], 0
    %s17 = scalar_lea.sflag [#allocation3], 1
    %18 = vsyncpa %s17, 0
    %19 = vsyncpa [#allocation6], 0
    %s20 = scalar_lea.sflag [#allocation6], 1
    %21 = vsyncpa %s20, 0
    %22 = vsyncpa [#allocation9], 0
    %23 = vsyncpa [#allocation12], 0
    %24 = vsyncpa [#allocation4], 0
    %s25 = scalar_lea.sflag [#allocation4], 1
    %26 = vsyncpa %s25, 0
    loop: start=0, step=1, limit=4
    $region2: #{tpu_custom_call.1} parent=1 // loop_pre_header
      _
    $region3: #{tpu_custom_call.1} parent=1 // loop_header
      %s28 = sphi 0, %s32
      %p29 = scmp.ge.s32.totalorder %s28, 4
      %s38 = sphi 0, %s40
      %s41 = sphi 0, %s38
      %s42 = sphi 0, %s41
      %s58 = sphi 0, %s42
      %s64 = sphi 0, %s66
      %s67 = sphi 0, %s64
      %s68 = sphi 0, %s67
      %s84 = sphi 0, %s68
      %s90 = sphi 0, %s92
      %s93 = sphi 0, %s90
      %s94 = sphi 0, %s93
      %s110 = sphi 0, %s94
      %s114 = sphi 0, %s114
      %s116 = sphi 0, %s114
      %s117 = sphi 0, %s116
      %s131 = sphi 0, %s117
      %s135 = sphi 0, %s135
      %s137 = sphi 0, %s135
      %s138 = sphi 0, %s137
      %s152 = sphi 0, %s138
      %s156 = sphi 0, %s156
      %s158 = sphi 0, %s156
      %s159 = sphi 0, %s158
      %s173 = sphi 0, %s159
      %s177 = sphi 0, %s177
      %s179 = sphi 0, %s177
      %s180 = sphi 0, %s179
      %s194 = sphi 0, %s180
      %s198 = sphi 0, %s198
      %s200 = sphi 0, %s198
      %s201 = sphi 0, %s200
      %s215 = sphi 0, %s201
      %s219 = sphi 0, %s219
      %s221 = sphi 0, %s219
      %s222 = sphi 0, %s221
      %s236 = sphi 0, %s222
      %s240 = sphi 0, %s240
      %s242 = sphi 0, %s240
      %s243 = sphi 0, %s242
      %s257 = sphi 0, %s243
      %s261 = sphi 0, %s261
      %s263 = sphi 0, %s261
      %s264 = sphi 0, %s263
      %s278 = sphi 0, %s264
      %s284 = sphi 0, %s286
      %s287 = sphi 0, %s284
      %s288 = sphi 0, %s287
      %s304 = sphi 0, %s288
    $region4: #{tpu_custom_call.1} parent=1 // loop_header_branch
      %31 = sbr.rel (%p29) target = $region8
    $region5: #{tpu_custom_call.1} parent=1 // loop_body
      %s33 = ssub.s32 %s28, 1
      %s34 = ssub.s32 %s28, 2
      %s35 = sadd.s32 %s28, 1
      %s36 = ssub.s32 %s28, %s35
      %p37 = scmp.eq.s32.totalorder %s36, 0
      %s39 = sadd.s32 %s38, 1
      %s40 = scalar_select %p37, %s38, %s39
      %p43 = pneg %p37
      %p44 = scmp.eq.s32.totalorder %s28, 1
      %p45 = por %p43, %p44
      %p46 = scmp.ne.s32.totalorder %s38, %s41
      %p47 = scmp.eq.s32.totalorder %s28, 0
      %p48 = por %p46, %p47
      %p49 = scmp.ne.s32.totalorder %s38, %s41
      %p50 = scmp.eq.s32.totalorder %s33, 1
      %p51 = por %p49, %p50
      %p52 = scmp.ne.s32.totalorder %s41, %s42
      %p53 = scmp.eq.s32.totalorder %s33, 0
      %p54 = por %p52, %p53
      %p55 = scmp.ne.s32.totalorder %s41, %s42
      %p56 = scmp.eq.s32.totalorder %s34, 1
      %p57 = por %p55, %p56
      %p59 = scmp.ne.s32.totalorder %s42, %s58
      %p60 = scmp.eq.s32.totalorder %s34, 0
      %p61 = por %p59, %p60
      %s62 = ssub.s32 %s28, %s35
      %p63 = scmp.eq.s32.totalorder %s62, 0
      %s65 = sadd.s32 %s64, 1
      %s66 = scalar_select %p63, %s64, %s65
      %p69 = pneg %p63
      %p70 = scmp.eq.s32.totalorder %s28, 1
      %p71 = por %p69, %p70
      %p72 = scmp.ne.s32.totalorder %s64, %s67
      %p73 = scmp.eq.s32.totalorder %s28, 0
      %p74 = por %p72, %p73
      %p75 = scmp.ne.s32.totalorder %s64, %s67
      %p76 = scmp.eq.s32.totalorder %s33, 1
      %p77 = por %p75, %p76
      %p78 = scmp.ne.s32.totalorder %s67, %s68
      %p79 = scmp.eq.s32.totalorder %s33, 0
      %p80 = por %p78, %p79
      %p81 = scmp.ne.s32.totalorder %s67, %s68
      %p82 = scmp.eq.s32.totalorder %s34, 1
      %p83 = por %p81, %p82
      %p85 = scmp.ne.s32.totalorder %s68, %s84
      %p86 = scmp.eq.s32.totalorder %s34, 0
      %p87 = por %p85, %p86
      %s88 = ssub.s32 %s28, %s35
      %p89 = scmp.eq.s32.totalorder %s88, 0
      %s91 = sadd.s32 %s90, 1
      %s92 = scalar_select %p89, %s90, %s91
      %p95 = pneg %p89
      %p96 = scmp.eq.s32.totalorder %s28, 1
      %p97 = por %p95, %p96
      %p98 = scmp.ne.s32.totalorder %s90, %s93
      %p99 = scmp.eq.s32.totalorder %s28, 0
      %p100 = por %p98, %p99
      %p101 = scmp.ne.s32.totalorder %s90, %s93
      %p102 = scmp.eq.s32.totalorder %s33, 1
      %p103 = por %p101, %p102
      %p104 = scmp.ne.s32.totalorder %s93, %s94
      %p105 = scmp.eq.s32.totalorder %s33, 0
      %p106 = por %p104, %p105
      %p107 = scmp.ne.s32.totalorder %s93, %s94
      %p108 = scmp.eq.s32.totalorder %s34, 1
      %p109 = por %p107, %p108
      %p111 = scmp.ne.s32.totalorder %s94, %s110
      %p112 = scmp.eq.s32.totalorder %s34, 0
      %p113 = por %p111, %p112
      %s115 = sadd.s32 %s114, 1
      %p118 = scmp.eq.s32.totalorder %s28, 1
      %p119 = scmp.ne.s32.totalorder %s114, %s116
      %p120 = scmp.eq.s32.totalorder %s28, 0
      %p121 = por %p119, %p120
      %p122 = scmp.ne.s32.totalorder %s114, %s116
      %p123 = scmp.eq.s32.totalorder %s33, 1
      %p124 = por %p122, %p123
      %p125 = scmp.ne.s32.totalorder %s116, %s117
      %p126 = scmp.eq.s32.totalorder %s33, 0
      %p127 = por %p125, %p126
      %p128 = scmp.ne.s32.totalorder %s116, %s117
      %p129 = scmp.eq.s32.totalorder %s34, 1
      %p130 = por %p128, %p129
      %p132 = scmp.ne.s32.totalorder %s117, %s131
      %p133 = scmp.eq.s32.totalorder %s34, 0
      %p134 = por %p132, %p133
      %s136 = sadd.s32 %s135, 1
      %p139 = scmp.eq.s32.totalorder %s28, 1
      %p140 = scmp.ne.s32.totalorder %s135, %s137
      %p141 = scmp.eq.s32.totalorder %s28, 0
      %p142 = por %p140, %p141
      %p143 = scmp.ne.s32.totalorder %s135, %s137
      %p144 = scmp.eq.s32.totalorder %s33, 1
      %p145 = por %p143, %p144
      %p146 = scmp.ne.s32.totalorder %s137, %s138
      %p147 = scmp.eq.s32.totalorder %s33, 0
      %p148 = por %p146, %p147
      %p149 = scmp.ne.s32.totalorder %s137, %s138
      %p150 = scmp.eq.s32.totalorder %s34, 1
      %p151 = por %p149, %p150
      %p153 = scmp.ne.s32.totalorder %s138, %s152
      %p154 = scmp.eq.s32.totalorder %s34, 0
      %p155 = por %p153, %p154
      %s157 = sadd.s32 %s156, 1
      %p160 = scmp.eq.s32.totalorder %s28, 1
      %p161 = scmp.ne.s32.totalorder %s156, %s158
      %p162 = scmp.eq.s32.totalorder %s28, 0
      %p163 = por %p161, %p162
      %p164 = scmp.ne.s32.totalorder %s156, %s158
      %p165 = scmp.eq.s32.totalorder %s33, 1
      %p166 = por %p164, %p165
      %p167 = scmp.ne.s32.totalorder %s158, %s159
      %p168 = scmp.eq.s32.totalorder %s33, 0
      %p169 = por %p167, %p168
      %p170 = scmp.ne.s32.totalorder %s158, %s159
      %p171 = scmp.eq.s32.totalorder %s34, 1
      %p172 = por %p170, %p171
      %p174 = scmp.ne.s32.totalorder %s159, %s173
      %p175 = scmp.eq.s32.totalorder %s34, 0
      %p176 = por %p174, %p175
      %s178 = sadd.s32 %s177, 1
      %p181 = scmp.eq.s32.totalorder %s28, 1
      %p182 = scmp.ne.s32.totalorder %s177, %s179
      %p183 = scmp.eq.s32.totalorder %s28, 0
      %p184 = por %p182, %p183
      %p185 = scmp.ne.s32.totalorder %s177, %s179
      %p186 = scmp.eq.s32.totalorder %s33, 1
      %p187 = por %p185, %p186
      %p188 = scmp.ne.s32.totalorder %s179, %s180
      %p189 = scmp.eq.s32.totalorder %s33, 0
      %p190 = por %p188, %p189
      %p191 = scmp.ne.s32.totalorder %s179, %s180
      %p192 = scmp.eq.s32.totalorder %s34, 1
      %p193 = por %p191, %p192
      %p195 = scmp.ne.s32.totalorder %s180, %s194
      %p196 = scmp.eq.s32.totalorder %s34, 0
      %p197 = por %p195, %p196
      %s199 = sadd.s32 %s198, 1
      %p202 = scmp.eq.s32.totalorder %s28, 1
      %p203 = scmp.ne.s32.totalorder %s198, %s200
      %p204 = scmp.eq.s32.totalorder %s28, 0
      %p205 = por %p203, %p204
      %p206 = scmp.ne.s32.totalorder %s198, %s200
      %p207 = scmp.eq.s32.totalorder %s33, 1
      %p208 = por %p206, %p207
      %p209 = scmp.ne.s32.totalorder %s200, %s201
      %p210 = scmp.eq.s32.totalorder %s33, 0
      %p211 = por %p209, %p210
      %p212 = scmp.ne.s32.totalorder %s200, %s201
      %p213 = scmp.eq.s32.totalorder %s34, 1
      %p214 = por %p212, %p213
      %p216 = scmp.ne.s32.totalorder %s201, %s215
      %p217 = scmp.eq.s32.totalorder %s34, 0
      %p218 = por %p216, %p217
      %s220 = sadd.s32 %s219, 1
      %p223 = scmp.eq.s32.totalorder %s28, 1
      %p224 = scmp.ne.s32.totalorder %s219, %s221
      %p225 = scmp.eq.s32.totalorder %s28, 0
      %p226 = por %p224, %p225
      %p227 = scmp.ne.s32.totalorder %s219, %s221
      %p228 = scmp.eq.s32.totalorder %s33, 1
      %p229 = por %p227, %p228
      %p230 = scmp.ne.s32.totalorder %s221, %s222
      %p231 = scmp.eq.s32.totalorder %s33, 0
      %p232 = por %p230, %p231
      %p233 = scmp.ne.s32.totalorder %s221, %s222
      %p234 = scmp.eq.s32.totalorder %s34, 1
      %p235 = por %p233, %p234
      %p237 = scmp.ne.s32.totalorder %s222, %s236
      %p238 = scmp.eq.s32.totalorder %s34, 0
      %p239 = por %p237, %p238
      %s241 = sadd.s32 %s240, 1
      %p244 = scmp.eq.s32.totalorder %s28, 1
      %p245 = scmp.ne.s32.totalorder %s240, %s242
      %p246 = scmp.eq.s32.totalorder %s28, 0
      %p247 = por %p245, %p246
      %p248 = scmp.ne.s32.totalorder %s240, %s242
      %p249 = scmp.eq.s32.totalorder %s33, 1
      %p250 = por %p248, %p249
      %p251 = scmp.ne.s32.totalorder %s242, %s243
      %p252 = scmp.eq.s32.totalorder %s33, 0
      %p253 = por %p251, %p252
      %p254 = scmp.ne.s32.totalorder %s242, %s243
      %p255 = scmp.eq.s32.totalorder %s34, 1
      %p256 = por %p254, %p255
      %p258 = scmp.ne.s32.totalorder %s243, %s257
      %p259 = scmp.eq.s32.totalorder %s34, 0
      %p260 = por %p258, %p259
      %s262 = sadd.s32 %s261, 1
      %p265 = scmp.eq.s32.totalorder %s28, 1
      %p266 = scmp.ne.s32.totalorder %s261, %s263
      %p267 = scmp.eq.s32.totalorder %s28, 0
      %p268 = por %p266, %p267
      %p269 = scmp.ne.s32.totalorder %s261, %s263
      %p270 = scmp.eq.s32.totalorder %s33, 1
      %p271 = por %p269, %p270
      %p272 = scmp.ne.s32.totalorder %s263, %s264
      %p273 = scmp.eq.s32.totalorder %s33, 0
      %p274 = por %p272, %p273
      %p275 = scmp.ne.s32.totalorder %s263, %s264
      %p276 = scmp.eq.s32.totalorder %s34, 1
      %p277 = por %p275, %p276
      %p279 = scmp.ne.s32.totalorder %s264, %s278
      %p280 = scmp.eq.s32.totalorder %s34, 0
      %p281 = por %p279, %p280
      %s282 = ssub.s32 %s28, %s35
      %p283 = scmp.eq.s32.totalorder %s282, 0
      %s285 = sadd.s32 %s284, 1
      %s286 = scalar_select %p283, %s284, %s285
      %p289 = pneg %p283
      %p290 = scmp.eq.s32.totalorder %s28, 1
      %p291 = por %p289, %p290
      %p292 = scmp.ne.s32.totalorder %s284, %s287
      %p293 = scmp.eq.s32.totalorder %s28, 0
      %p294 = por %p292, %p293
      %p295 = scmp.ne.s32.totalorder %s284, %s287
      %p296 = scmp.eq.s32.totalorder %s33, 1
      %p297 = por %p295, %p296
      %p298 = scmp.ne.s32.totalorder %s287, %s288
      %p299 = scmp.eq.s32.totalorder %s33, 0
      %p300 = por %p298, %p299
      %p301 = scmp.ne.s32.totalorder %s287, %s288
      %p302 = scmp.eq.s32.totalorder %s34, 1
      %p303 = por %p301, %p302
      %p305 = scmp.ne.s32.totalorder %s288, %s304
      %p306 = scmp.eq.s32.totalorder %s34, 0
      %p307 = por %p305, %p306
      %p308 = scmp.le.s32.totalorder 1, %s28
      %p309 = scmp.lt.s32.totalorder %s28, 3
      %p310 = pnand %p308, %p309
      %p311 = pneg %p310
      // Predicated region
      $region9: #{tpu_custom_call.1} parent=5 // pred_check
        _
      $region10: #{tpu_custom_call.1} parent=5 // pred_check_branch
        %313 = sbr.rel (%p310) target = $region12
      $region11: #{tpu_custom_call.1} parent=5 // pred_region
        %s314 = ssub.s32 %s28, 1
        // Predicated region
        $region13: #{tpu_custom_call.1} parent=11 // pred_check
          %p315 = pneg %p127
        $region14: #{tpu_custom_call.1} parent=11 // pred_check_branch
          %317 = sbr.rel (%p315) target = $region16
        $region15: #{tpu_custom_call.1} parent=11 // pred_region
          %319 = vsyncadd [#allocation9], 0
          %s320 = sshll.u32 %s3, 4
          %s321 = int_to_ptr.hbm [resolvable:$true] %s320
          %s322 = sshll.u32 [#allocation8], 4
          %s323 = int_to_ptr.vmem [resolvable:$true] %s322
          %328 = dma.hbm_to_vmem [thread:$0]  %s321, 256, %s323, [#allocation9], 64, 64, 4
        $region16: #{tpu_custom_call.1} parent=11 // pred_fallthru
          _
        // Predicated region
        $region17: #{tpu_custom_call.1} parent=11 // pred_check
          %p329 = pneg %p148
        $region18: #{tpu_custom_call.1} parent=11 // pred_check_branch
          %331 = sbr.rel (%p329) target = $region20
        $region19: #{tpu_custom_call.1} parent=11 // pred_region
          _
        $region20: #{tpu_custom_call.1} parent=11 // pred_fallthru
          _
        // Predicated region
        $region21: #{tpu_custom_call.1} parent=11 // pred_check
          %p332 = pneg %p169
        $region22: #{tpu_custom_call.1} parent=11 // pred_check_branch
          %334 = sbr.rel (%p332) target = $region24
        $region23: #{tpu_custom_call.1} parent=11 // pred_region
          %336 = vsyncadd [#allocation9], 0
          %s337 = sshll.u32 %s5, 4
          %s338 = int_to_ptr.hbm [resolvable:$true] %s337
          %s339 = sshll.u32 [#allocation10], 4
          %s340 = int_to_ptr.vmem [resolvable:$true] %s339
          %345 = dma.hbm_to_vmem [thread:$0]  %s338, 256, %s340, [#allocation9], 64, 64, 4
        $region24: #{tpu_custom_call.1} parent=11 // pred_fallthru
          _
        // Predicated region
        $region25: #{tpu_custom_call.1} parent=11 // pred_check
          %p346 = pneg %p190
        $region26: #{tpu_custom_call.1} parent=11 // pred_check_branch
          %348 = sbr.rel (%p346) target = $region28
        $region27: #{tpu_custom_call.1} parent=11 // pred_region
          _
        $region28: #{tpu_custom_call.1} parent=11 // pred_fallthru
          _
        // Predicated region
        $region29: #{tpu_custom_call.1} parent=11 // pred_check
          %p349 = pneg %p211
        $region30: #{tpu_custom_call.1} parent=11 // pred_check_branch
          %351 = sbr.rel (%p349) target = $region32
        $region31: #{tpu_custom_call.1} parent=11 // pred_region
          %353 = vsyncadd [#allocation12], 0
          %s354 = sshll.u32 %s7, 4
          %s355 = int_to_ptr.hbm [resolvable:$true] %s354
          %s356 = sshll.u32 [#allocation11], 4
          %s357 = int_to_ptr.vmem [resolvable:$true] %s356
          %362 = dma.hbm_to_vmem [thread:$0]  %s355, 256, %s357, [#allocation12], 64, 64, 4
        $region32: #{tpu_custom_call.1} parent=11 // pred_fallthru
          _
        // Predicated region
        $region33: #{tpu_custom_call.1} parent=11 // pred_check
          %p363 = pneg %p232
        $region34: #{tpu_custom_call.1} parent=11 // pred_check_branch
          %365 = sbr.rel (%p363) target = $region36
        $region35: #{tpu_custom_call.1} parent=11 // pred_region
          _
        $region36: #{tpu_custom_call.1} parent=11 // pred_fallthru
          _
        // Predicated region
        $region37: #{tpu_custom_call.1} parent=11 // pred_check
          %p366 = pneg %p253
        $region38: #{tpu_custom_call.1} parent=11 // pred_check_branch
          %368 = sbr.rel (%p366) target = $region40
        $region39: #{tpu_custom_call.1} parent=11 // pred_region
          %370 = vsyncadd [#allocation12], 0
          %s371 = sshll.u32 %s9, 4
          %s372 = int_to_ptr.hbm [resolvable:$true] %s371
          %s373 = sshll.u32 [#allocation13], 4
          %s374 = int_to_ptr.vmem [resolvable:$true] %s373
          %379 = dma.hbm_to_vmem [thread:$0]  %s372, 256, %s374, [#allocation12], 64, 64, 4
        $region40: #{tpu_custom_call.1} parent=11 // pred_fallthru
          _
        // Predicated region
        $region41: #{tpu_custom_call.1} parent=11 // pred_check
          %p380 = pneg %p274
        $region42: #{tpu_custom_call.1} parent=11 // pred_check_branch
          %382 = sbr.rel (%p380) target = $region44
        $region43: #{tpu_custom_call.1} parent=11 // pred_region
          _
        $region44: #{tpu_custom_call.1} parent=11 // pred_fallthru
          _
      $region12: #{tpu_custom_call.1} parent=5 // pred_fallthru
        _
      %p383 = scmp.lt.s32.totalorder %s28, 2
      // Predicated region
      $region45: #{tpu_custom_call.1} parent=5 // pred_check
        %p384 = pneg %p383
      $region46: #{tpu_custom_call.1} parent=5 // pred_check_branch
        %386 = sbr.rel (%p384) target = $region48
      $region47: #{tpu_custom_call.1} parent=5 // pred_region
        // Predicated region
        $region49: #{tpu_custom_call.1} parent=47 // pred_check
          %p387 = pneg %p48
        $region50: #{tpu_custom_call.1} parent=47 // pred_check_branch
          %389 = sbr.rel (%p387) target = $region52
        $region51: #{tpu_custom_call.1} parent=47 // pred_region
          %s390 = sand.u32 %s38, 1
          %s391 = scalar_lea.sflag [#allocation3], %s390
          %s392 = sand.u32 %s38, 1
          %s393 = smul.addr %s392, 4
          %s394 = scalar_lea.vmem [#allocation2], %s393
          %396 = vsyncadd %s391, 0
          %s397 = smul.addr %s28, 4
          %s398 = scalar_lea.hbm %s0, %s397
          %s400 = sshll.u32 %s398, 4
          %s401 = int_to_ptr.hbm [resolvable:$true] %s400
          %s402 = sshll.u32 %s394, 4
          %s403 = int_to_ptr.vmem [resolvable:$true] %s402
          %405 = dma.hbm_to_vmem [thread:$0]  %s401, 64, %s403, %s391
        $region52: #{tpu_custom_call.1} parent=47 // pred_fallthru
          _
        // Predicated region
        $region53: #{tpu_custom_call.1} parent=47 // pred_check
          %p406 = pneg %p74
        $region54: #{tpu_custom_call.1} parent=47 // pred_check_branch
          %408 = sbr.rel (%p406) target = $region56
        $region55: #{tpu_custom_call.1} parent=47 // pred_region
          %s409 = sand.u32 %s28, 1
          %s410 = scalar_lea.sflag [#allocation6], %s409
          %s411 = sand.u32 %s64, 1
          %s412 = smul.addr %s411, 4
          %s413 = scalar_lea.vmem [#allocation5], %s412
          %415 = vsyncadd %s410, 0
          %s416 = smul.addr %s28, 4
          %s417 = scalar_lea.hbm %s1, %s416
          %s419 = sshll.u32 %s417, 4
          %s420 = int_to_ptr.hbm [resolvable:$true] %s419
          %s421 = sshll.u32 %s413, 4
          %s422 = int_to_ptr.vmem [resolvable:$true] %s421
          %424 = dma.hbm_to_vmem [thread:$0]  %s420, 64, %s422, %s410
        $region56: #{tpu_custom_call.1} parent=47 // pred_fallthru
          _
        // Predicated region
        $region57: #{tpu_custom_call.1} parent=47 // pred_check
          %p425 = pneg %p100
        $region58: #{tpu_custom_call.1} parent=47 // pred_check_branch
          %427 = sbr.rel (%p425) target = $region60
        $region59: #{tpu_custom_call.1} parent=47 // pred_region
          %s428 = sand.u32 %s28, 1
          %s429 = scalar_lea.sflag [#allocation6], %s428
          %s430 = sand.u32 %s90, 1
          %s431 = smul.addr %s430, 4
          %s432 = scalar_lea.vmem [#allocation7], %s431
          %434 = vsyncadd %s429, 0
          %s435 = smul.addr %s28, 4
          %s436 = scalar_lea.hbm %s2, %s435
          %s438 = sshll.u32 %s436, 4
          %s439 = int_to_ptr.hbm [resolvable:$true] %s438
          %s440 = sshll.u32 %s432, 4
          %s441 = int_to_ptr.vmem [resolvable:$true] %s440
          %443 = dma.hbm_to_vmem [thread:$0]  %s439, 64, %s441, %s429
        $region60: #{tpu_custom_call.1} parent=47 // pred_fallthru
          _
      $region48: #{tpu_custom_call.1} parent=5 // pred_fallthru
        _
      %p444 = scmp.le.s32.totalorder 1, %s28
      %p445 = scmp.lt.s32.totalorder %s28, 3
      %p446 = pnand %p444, %p445
      %p447 = pneg %p446
      // Predicated region
      $region61: #{tpu_custom_call.1} parent=5 // pred_check
        _
      $region62: #{tpu_custom_call.1} parent=5 // pred_check_branch
        %449 = sbr.rel (%p446) target = $region64
      $region63: #{tpu_custom_call.1} parent=5 // pred_region
        %s450 = ssub.s32 %s28, 1
        %s451 = sand.u32 %s41, 1
        %s452 = scalar_lea.sflag [#allocation3], %s451
        %s453 = sand.u32 %s41, 1
        %s454 = smul.addr %s453, 4
        %s455 = scalar_lea.vmem [#allocation2], %s454
        // Predicated region
        $region65: #{tpu_custom_call.1} parent=63 // pred_check
          %p456 = pneg %p54
        $region66: #{tpu_custom_call.1} parent=63 // pred_check_branch
          %458 = sbr.rel (%p456) target = $region68
        $region67: #{tpu_custom_call.1} parent=63 // pred_region
          %460 = dma.done %s452, 64
        $region68: #{tpu_custom_call.1} parent=63 // pred_fallthru
          _
        %s461 = sand.u32 %s33, 1
        %s462 = scalar_lea.sflag [#allocation6], %s461
        %s463 = sand.u32 %s67, 1
        %s464 = smul.addr %s463, 4
        %s465 = scalar_lea.vmem [#allocation5], %s464
        // Predicated region
        $region69: #{tpu_custom_call.1} parent=63 // pred_check
          %p466 = pneg %p80
        $region70: #{tpu_custom_call.1} parent=63 // pred_check_branch
          %468 = sbr.rel (%p466) target = $region72
        $region71: #{tpu_custom_call.1} parent=63 // pred_region
          %470 = dma.done %s462, 64
        $region72: #{tpu_custom_call.1} parent=63 // pred_fallthru
          _
        %s471 = sand.u32 %s33, 1
        %s472 = scalar_lea.sflag [#allocation6], %s471
        %s473 = sand.u32 %s93, 1
        %s474 = smul.addr %s473, 4
        %s475 = scalar_lea.vmem [#allocation7], %s474
        // Predicated region
        $region73: #{tpu_custom_call.1} parent=63 // pred_check
          %p476 = pneg %p106
        $region74: #{tpu_custom_call.1} parent=63 // pred_check_branch
          %478 = sbr.rel (%p476) target = $region76
        $region75: #{tpu_custom_call.1} parent=63 // pred_region
          %480 = dma.done %s472, 64
        $region76: #{tpu_custom_call.1} parent=63 // pred_fallthru
          _
        // Predicated region
        $region77: #{tpu_custom_call.1} parent=63 // pred_check
          %p481 = pneg %p127
        $region78: #{tpu_custom_call.1} parent=63 // pred_check_branch
          %483 = sbr.rel (%p481) target = $region80
        $region79: #{tpu_custom_call.1} parent=63 // pred_region
          %485 = dma.done [#allocation9], 256
        $region80: #{tpu_custom_call.1} parent=63 // pred_fallthru
          _
        // Predicated region
        $region81: #{tpu_custom_call.1} parent=63 // pred_check
          %p486 = pneg %p169
        $region82: #{tpu_custom_call.1} parent=63 // pred_check_branch
          %488 = sbr.rel (%p486) target = $region84
        $region83: #{tpu_custom_call.1} parent=63 // pred_region
          %490 = dma.done [#allocation9], 256
        $region84: #{tpu_custom_call.1} parent=63 // pred_fallthru
          _
        // Predicated region
        $region85: #{tpu_custom_call.1} parent=63 // pred_check
          %p491 = pneg %p211
        $region86: #{tpu_custom_call.1} parent=63 // pred_check_branch
          %493 = sbr.rel (%p491) target = $region88
        $region87: #{tpu_custom_call.1} parent=63 // pred_region
          %495 = dma.done [#allocation12], 256
        $region88: #{tpu_custom_call.1} parent=63 // pred_fallthru
          _
        // Predicated region
        $region89: #{tpu_custom_call.1} parent=63 // pred_check
          %p496 = pneg %p253
        $region90: #{tpu_custom_call.1} parent=63 // pred_check_branch
          %498 = sbr.rel (%p496) target = $region92
        $region91: #{tpu_custom_call.1} parent=63 // pred_region
          %500 = dma.done [#allocation12], 256
        $region92: #{tpu_custom_call.1} parent=63 // pred_fallthru
          _
        %s501 = sand.u32 %s41, 1
        %s502 = scalar_lea.sflag [#allocation3], %s501
        %s503 = sand.u32 %s41, 1
        %s504 = smul.addr %s503, 4
        %s505 = scalar_lea.vmem [#allocation2], %s504
        %p506 = pneg %p54
        %p507 = pneg %p51
        %s508 = sand.u32 %s33, 1
        %s509 = scalar_lea.sflag [#allocation6], %s508
        %s510 = sand.u32 %s67, 1
        %s511 = smul.addr %s510, 4
        %s512 = scalar_lea.vmem [#allocation5], %s511
        %p513 = pneg %p80
        %p514 = pneg %p77
        %s515 = sand.u32 %s33, 1
        %s516 = scalar_lea.sflag [#allocation6], %s515
        %s517 = sand.u32 %s93, 1
        %s518 = smul.addr %s517, 4
        %s519 = scalar_lea.vmem [#allocation7], %s518
        %p520 = pneg %p106
        %p521 = pneg %p103
        %p522 = pneg %p127
        %p523 = pneg %p124
        %p524 = pneg %p148
        %p525 = pneg %p145
        %p526 = pneg %p169
        %p527 = pneg %p166
        %p528 = pneg %p190
        %p529 = pneg %p187
        %p530 = pneg %p211
        %p531 = pneg %p208
        %p532 = pneg %p232
        %p533 = pneg %p229
        %p534 = pneg %p253
        %p535 = pneg %p250
        %p536 = pneg %p274
        %p537 = pneg %p271
        %p538 = pneg %p300
        %p539 = pneg %p297
        %s540 = sand.u32 %s287, 1
        %s541 = scalar_lea.sflag [#allocation4], %s540
        %s542 = sand.u32 %s287, 1
        %s543 = smul.addr %s542, 8
        %s544 = scalar_lea.vmem [#allocation14], %s543
        %v546 = vld [vmem:[%s455] sm:$0xf]
        %v547 = vld [vmem:[#allocation8] sm:$0xf]
        %v548 = vld [vmem:[#allocation8 + $0x4] sm:$0xf]
        %v549 = vld [vmem:[#allocation8 + $0x8] sm:$0xf]
        %v550 = vld [vmem:[#allocation8 + $0xc] sm:$0xf]
        %v551 = vld [vmem:[%s4] sm:$0x1]
        %v553 = vperm.slane %v551, 0
        %v559 = vunpack.c.l.b16 %v547
        %v560 = vunpack.c.l.b16 %v548
        %v561 = vunpack.c.l.b16 %v549
        %v562 = vunpack.c.l.b16 %v550
        %v563 = vpack.c.b16 %v560, %v559
        %v564 = vpack.c.b16 %v562, %v561
        %vm567 = vcmask 261120
        %v569 = vsel %vm567, %v546, 0
        %571 = vmatpush.bf16.msra.mxu0 0
        %572 = vmatpush.bf16.msra.mxu0 0
        %573 = vmatpush.bf16.msra.mxu0 0
        %574 = vmatpush.bf16.msra.mxu0 0
        %575 = vmatpush.bf16.msra.mxu0 0
        %576 = vmatpush.bf16.msra.mxu0 0
        %577 = vmatpush.bf16.msra.mxu0 %v564
        %578 = vmatpush.bf16.msra.mxu0 %v563
        %579 = vmatmul.bf16.gmra.mxu0 %v569
        %v580 = vpop.f32.mrf.mxu0
        %v581 = vadd.f32 %v553, %v580
        %v582 = vpop.f32.mrf.mxu0
        %583 = vdwg.mxu0
        %585 = vrot.lane.b32.xlu0 %v581, 120
        %v586 = vpop.permute.xlu0 %585
        %588 = vrot.lane.b32.xlu0 %v581, 112
        %v589 = vpop.permute.xlu0 %588
        %591 = vrot.lane.b32.xlu0 %v581, 104
        %v592 = vpop.permute.xlu0 %591
        %v594 = vrot.slane %v589, 4
        %vm595 = vcmask 1047556
        %v596 = vsel %vm595, %v594, %v581
        %v597 = vrot.slane %v581, 4
        %v598 = vsel %vm595, %v589, %v597
        %v600 = vunpack.c.l.s4 1983009808
        %v601 = vunpack.c.0.s8 %v600
        %v602 = vperm.slane %v596, %v601
        %v604 = vunpack.c.l.s4 1983009808
        %v605 = vunpack.c.0.s8 %v604
        %v606 = vperm.slane %v598, %v605
        %v607 = vrot.slane %v592, 4
        %v608 = vsel %vm595, %v607, %v586
        %v609 = vrot.slane %v586, 4
        %v610 = vsel %vm595, %v592, %v609
        %v612 = vunpack.c.l.s4 1983009808
        %v613 = vunpack.c.0.s8 %v612
        %v614 = vperm.slane %v608, %v613
        %v616 = vunpack.c.l.s4 1983009808
        %v617 = vunpack.c.0.s8 %v616
        %v618 = vperm.slane %v610, %v617
        %v619 = vrot.slane %v614, 4
        %v620 = vsel %vm595, %v619, %v602
        %v621 = vrot.slane %v602, 4
        %v622 = vsel %vm595, %v614, %v621
        %v624 = vunpack.c.l.s4 1934713408
        %v625 = vunpack.c.0.s8 %v624
        %v626 = vperm.slane %v620, %v625
        %v628 = vunpack.c.l.s4 1934713408
        %v629 = vunpack.c.0.s8 %v628
        %v630 = vperm.slane %v622, %v629
        %v631 = vrot.slane %v618, 4
        %v632 = vsel %vm595, %v631, %v606
        %v633 = vrot.slane %v606, 4
        %v634 = vsel %vm595, %v618, %v633
        %v636 = vunpack.c.l.s4 1934713408
        %v637 = vunpack.c.0.s8 %v636
        %v638 = vperm.slane %v632, %v637
        %v640 = vunpack.c.l.s4 1934713408
        %v641 = vunpack.c.0.s8 %v640
        %v642 = vperm.slane %v634, %v641
        %v643 = vrot.slane %v626, 4
        %v644 = vsel %vm595, 0.0, %v643
        %v645 = vrot.slane %v630, 4
        %v646 = vsel %vm595, 0.0, %v645
        %v647 = vrot.slane %v638, 4
        %v648 = vsel %vm595, 0.0, %v647
        %v649 = vrot.slane %v642, 4
        %v650 = vsel %vm595, 0.0, %v649
        %v651 = vsel %vm595, %v645, %v626
        %v653 = vunpack.c.l.s4 1983009808
        %v654 = vunpack.c.0.s8 %v653
        %v655 = vperm.slane %v651, %v654
        %v656 = vrot.slane %v646, 4
        %v657 = vsel %vm595, %v656, %v644
        %v659 = vunpack.c.l.s4 1983009808
        %v660 = vunpack.c.0.s8 %v659
        %v661 = vperm.slane %v657, %v660
        %v662 = vsel %vm595, %v649, %v638
        %v664 = vunpack.c.l.s4 1983009808
        %v665 = vunpack.c.0.s8 %v664
        %v666 = vperm.slane %v662, %v665
        %v667 = vrot.slane %v650, 4
        %v668 = vsel %vm595, %v667, %v648
        %v670 = vunpack.c.l.s4 1983009808
        %v671 = vunpack.c.0.s8 %v670
        %v672 = vperm.slane %v668, %v671
        %v673 = vrot.slane %v661, 4
        %v674 = vsel %vm595, %v673, %v655
        %v675 = vrot.slane %v655, 4
        %v676 = vsel %vm595, %v661, %v675
        %v678 = vunpack.c.l.s4 1934713408
        %v679 = vunpack.c.0.s8 %v678
        %v680 = vperm.slane %v674, %v679
        %v682 = vunpack.c.l.s4 1934713408
        %v683 = vunpack.c.0.s8 %v682
        %v684 = vperm.slane %v676, %v683
        %v685 = vrot.slane %v672, 4
        %v686 = vsel %vm595, %v685, %v666
        %v687 = vrot.slane %v666, 4
        %v688 = vsel %vm595, %v672, %v687
        %v690 = vunpack.c.l.s4 1934713408
        %v691 = vunpack.c.0.s8 %v690
        %v692 = vperm.slane %v686, %v691
        %v694 = vunpack.c.l.s4 1934713408
        %v695 = vunpack.c.0.s8 %v694
        %v696 = vperm.slane %v688, %v695
        %v697 = vrot.slane %v692, 4
        %v698 = vsel %vm595, %v697, %v680
        %v699 = vrot.slane %v680, 4
        %v700 = vsel %vm595, %v692, %v699
        %v701 = vrot.slane %v696, 4
        %v702 = vsel %vm595, %v701, %v684
        %v703 = vrot.slane %v684, 4
        %v704 = vsel %vm595, %v696, %v703
        %v705 = vld [vmem:[%s465] sm:$0xf]
        %v706 = vld [vmem:[#allocation10] sm:$0xf]
        %v707 = vld [vmem:[#allocation10 + $0x4] sm:$0xf]
        %v708 = vld [vmem:[#allocation10 + $0x8] sm:$0xf]
        %v709 = vld [vmem:[#allocation10 + $0xc] sm:$0xf]
        %v710 = vld [vmem:[%s6] sm:$0x1]
        %v712 = vperm.slane %v710, 0
        %v718 = vunpack.c.l.b16 %v706
        %v719 = vunpack.c.l.b16 %v707
        %v720 = vunpack.c.l.b16 %v708
        %v721 = vunpack.c.l.b16 %v709
        %v722 = vpack.c.b16 %v719, %v718
        %v723 = vpack.c.b16 %v721, %v720
        %v727 = vsel %vm567, %v705, 0
        %729 = vmatpush.bf16.msra.mxu0 0
        %730 = vmatpush.bf16.msra.mxu0 0
        %731 = vmatpush.bf16.msra.mxu0 0
        %732 = vmatpush.bf16.msra.mxu0 0
        %733 = vmatpush.bf16.msra.mxu0 0
        %734 = vmatpush.bf16.msra.mxu0 0
        %735 = vmatpush.bf16.msra.mxu0 %v723
        %736 = vmatpush.bf16.msra.mxu0 %v722
        %737 = vmatmul.bf16.gmra.mxu0 %v727
        %v738 = vpop.f32.mrf.mxu0
        %v739 = vadd.f32 %v712, %v738
        %v740 = vpop.f32.mrf.mxu0
        %741 = vdwg.mxu0
        %743 = vrot.lane.b32.xlu0 %v739, 120
        %v744 = vpop.permute.xlu0 %743
        %746 = vrot.lane.b32.xlu0 %v739, 112
        %v747 = vpop.permute.xlu0 %746
        %749 = vrot.lane.b32.xlu0 %v739, 104
        %v750 = vpop.permute.xlu0 %749
        %v752 = vrot.slane %v747, 4
        %v753 = vsel %vm595, %v752, %v739
        %v754 = vrot.slane %v739, 4
        %v755 = vsel %vm595, %v747, %v754
        %v757 = vunpack.c.l.s4 1983009808
        %v758 = vunpack.c.0.s8 %v757
        %v759 = vperm.slane %v753, %v758
        %v761 = vunpack.c.l.s4 1983009808
        %v762 = vunpack.c.0.s8 %v761
        %v763 = vperm.slane %v755, %v762
        %v764 = vrot.slane %v750, 4
        %v765 = vsel %vm595, %v764, %v744
        %v766 = vrot.slane %v744, 4
        %v767 = vsel %vm595, %v750, %v766
        %v769 = vunpack.c.l.s4 1983009808
        %v770 = vunpack.c.0.s8 %v769
        %v771 = vperm.slane %v765, %v770
        %v773 = vunpack.c.l.s4 1983009808
        %v774 = vunpack.c.0.s8 %v773
        %v775 = vperm.slane %v767, %v774
        %v776 = vrot.slane %v771, 4
        %v777 = vsel %vm595, %v776, %v759
        %v778 = vrot.slane %v759, 4
        %v779 = vsel %vm595, %v771, %v778
        %v781 = vunpack.c.l.s4 1934713408
        %v782 = vunpack.c.0.s8 %v781
        %v783 = vperm.slane %v777, %v782
        %v785 = vunpack.c.l.s4 1934713408
        %v786 = vunpack.c.0.s8 %v785
        %v787 = vperm.slane %v779, %v786
        %v788 = vrot.slane %v775, 4
        %v789 = vsel %vm595, %v788, %v763
        %v790 = vrot.slane %v763, 4
        %v791 = vsel %vm595, %v775, %v790
        %v793 = vunpack.c.l.s4 1934713408
        %v794 = vunpack.c.0.s8 %v793
        %v795 = vperm.slane %v789, %v794
        %v797 = vunpack.c.l.s4 1934713408
        %v798 = vunpack.c.0.s8 %v797
        %v799 = vperm.slane %v791, %v798
        %v800 = vrot.slane %v783, 4
        %v801 = vsel %vm595, 0.0, %v800
        %v802 = vrot.slane %v787, 4
        %v803 = vsel %vm595, 0.0, %v802
        %v804 = vrot.slane %v795, 4
        %v805 = vsel %vm595, 0.0, %v804
        %v806 = vrot.slane %v799, 4
        %v807 = vsel %vm595, 0.0, %v806
        %v808 = vsel %vm595, %v802, %v783
        %v810 = vunpack.c.l.s4 1983009808
        %v811 = vunpack.c.0.s8 %v810
        %v812 = vperm.slane %v808, %v811
        %v813 = vrot.slane %v803, 4
        %v814 = vsel %vm595, %v813, %v801
        %v816 = vunpack.c.l.s4 1983009808
        %v817 = vunpack.c.0.s8 %v816
        %v818 = vperm.slane %v814, %v817
        %v819 = vsel %vm595, %v806, %v795
        %v821 = vunpack.c.l.s4 1983009808
        %v822 = vunpack.c.0.s8 %v821
        %v823 = vperm.slane %v819, %v822
        %v824 = vrot.slane %v807, 4
        %v825 = vsel %vm595, %v824, %v805
        %v827 = vunpack.c.l.s4 1983009808
        %v828 = vunpack.c.0.s8 %v827
        %v829 = vperm.slane %v825, %v828
        %v830 = vrot.slane %v818, 4
        %v831 = vsel %vm595, %v830, %v812
        %v832 = vrot.slane %v812, 4
        %v833 = vsel %vm595, %v818, %v832
        %v835 = vunpack.c.l.s4 1934713408
        %v836 = vunpack.c.0.s8 %v835
        %v837 = vperm.slane %v831, %v836
        %v839 = vunpack.c.l.s4 1934713408
        %v840 = vunpack.c.0.s8 %v839
        %v841 = vperm.slane %v833, %v840
        %v842 = vrot.slane %v829, 4
        %v843 = vsel %vm595, %v842, %v823
        %v844 = vrot.slane %v823, 4
        %v845 = vsel %vm595, %v829, %v844
        %v847 = vunpack.c.l.s4 1934713408
        %v848 = vunpack.c.0.s8 %v847
        %v849 = vperm.slane %v843, %v848
        %v851 = vunpack.c.l.s4 1934713408
        %v852 = vunpack.c.0.s8 %v851
        %v853 = vperm.slane %v845, %v852
        %v854 = vrot.slane %v849, 4
        %v855 = vsel %vm595, %v854, %v837
        %v856 = vrot.slane %v837, 4
        %v857 = vsel %vm595, %v849, %v856
        %v858 = vrot.slane %v853, 4
        %v859 = vsel %vm595, %v858, %v841
        %v860 = vrot.slane %v841, 4
        %v861 = vsel %vm595, %v853, %v860
        %v862 = vld [vmem:[%s475] sm:$0xf]
        %v863 = vld [vmem:[#allocation11] sm:$0xf]
        %v864 = vld [vmem:[#allocation11 + $0x4] sm:$0xf]
        %v865 = vld [vmem:[#allocation11 + $0x8] sm:$0xf]
        %v866 = vld [vmem:[#allocation11 + $0xc] sm:$0xf]
        %v867 = vld [vmem:[%s8] sm:$0x1]
        %v869 = vperm.slane %v867, 0
        %v875 = vunpack.c.l.b16 %v863
        %v876 = vunpack.c.l.b16 %v864
        %v877 = vunpack.c.l.b16 %v865
        %v878 = vunpack.c.l.b16 %v866
        %v879 = vpack.c.b16 %v876, %v875
        %v880 = vpack.c.b16 %v878, %v877
        %v884 = vsel %vm567, %v862, 0
        %886 = vmatpush.bf16.msra.mxu0 0
        %887 = vmatpush.bf16.msra.mxu0 0
        %888 = vmatpush.bf16.msra.mxu0 0
        %889 = vmatpush.bf16.msra.mxu0 0
        %890 = vmatpush.bf16.msra.mxu0 0
        %891 = vmatpush.bf16.msra.mxu0 0
        %892 = vmatpush.bf16.msra.mxu0 %v880
        %893 = vmatpush.bf16.msra.mxu0 %v879
        %894 = vmatmul.bf16.gmra.mxu0 %v884
        %v895 = vpop.f32.mrf.mxu0
        %v896 = vadd.f32 %v869, %v895
        %v897 = vpop.f32.mrf.mxu0
        %898 = vdwg.mxu0
        %900 = vrot.lane.b32.xlu0 %v896, 120
        %v901 = vpop.permute.xlu0 %900
        %903 = vrot.lane.b32.xlu0 %v896, 112
        %v904 = vpop.permute.xlu0 %903
        %906 = vrot.lane.b32.xlu0 %v896, 104
        %v907 = vpop.permute.xlu0 %906
        %v909 = vrot.slane %v904, 4
        %v910 = vsel %vm595, %v909, %v896
        %v911 = vrot.slane %v896, 4
        %v912 = vsel %vm595, %v904, %v911
        %v914 = vunpack.c.l.s4 1983009808
        %v915 = vunpack.c.0.s8 %v914
        %v916 = vperm.slane %v910, %v915
        %v918 = vunpack.c.l.s4 1983009808
        %v919 = vunpack.c.0.s8 %v918
        %v920 = vperm.slane %v912, %v919
        %v921 = vrot.slane %v907, 4
        %v922 = vsel %vm595, %v921, %v901
        %v923 = vrot.slane %v901, 4
        %v924 = vsel %vm595, %v907, %v923
        %v926 = vunpack.c.l.s4 1983009808
        %v927 = vunpack.c.0.s8 %v926
        %v928 = vperm.slane %v922, %v927
        %v930 = vunpack.c.l.s4 1983009808
        %v931 = vunpack.c.0.s8 %v930
        %v932 = vperm.slane %v924, %v931
        %v933 = vrot.slane %v928, 4
        %v934 = vsel %vm595, %v933, %v916
        %v935 = vrot.slane %v916, 4
        %v936 = vsel %vm595, %v928, %v935
        %v938 = vunpack.c.l.s4 1934713408
        %v939 = vunpack.c.0.s8 %v938
        %v940 = vperm.slane %v934, %v939
        %v942 = vunpack.c.l.s4 1934713408
        %v943 = vunpack.c.0.s8 %v942
        %v944 = vperm.slane %v936, %v943
        %v945 = vrot.slane %v932, 4
        %v946 = vsel %vm595, %v945, %v920
        %v947 = vrot.slane %v920, 4
        %v948 = vsel %vm595, %v932, %v947
        %v950 = vunpack.c.l.s4 1934713408
        %v951 = vunpack.c.0.s8 %v950
        %v952 = vperm.slane %v946, %v951
        %v954 = vunpack.c.l.s4 1934713408
        %v955 = vunpack.c.0.s8 %v954
        %v956 = vperm.slane %v948, %v955
        %v957 = vrot.slane %v940, 4
        %v958 = vsel %vm595, 0.0, %v957
        %v959 = vrot.slane %v944, 4
        %v960 = vsel %vm595, 0.0, %v959
        %v961 = vrot.slane %v952, 4
        %v962 = vsel %vm595, 0.0, %v961
        %v963 = vrot.slane %v956, 4
        %v964 = vsel %vm595, 0.0, %v963
        %v965 = vsel %vm595, %v959, %v940
        %v967 = vunpack.c.l.s4 1983009808
        %v968 = vunpack.c.0.s8 %v967
        %v969 = vperm.slane %v965, %v968
        %v970 = vrot.slane %v960, 4
        %v971 = vsel %vm595, %v970, %v958
        %v973 = vunpack.c.l.s4 1983009808
        %v974 = vunpack.c.0.s8 %v973
        %v975 = vperm.slane %v971, %v974
        %v976 = vsel %vm595, %v963, %v952
        %v978 = vunpack.c.l.s4 1983009808
        %v979 = vunpack.c.0.s8 %v978
        %v980 = vperm.slane %v976, %v979
        %v981 = vrot.slane %v964, 4
        %v982 = vsel %vm595, %v981, %v962
        %v984 = vunpack.c.l.s4 1983009808
        %v985 = vunpack.c.0.s8 %v984
        %v986 = vperm.slane %v982, %v985
        %v987 = vrot.slane %v975, 4
        %v988 = vsel %vm595, %v987, %v969
        %v989 = vrot.slane %v969, 4
        %v990 = vsel %vm595, %v975, %v989
        %v992 = vunpack.c.l.s4 1934713408
        %v993 = vunpack.c.0.s8 %v992
        %v994 = vperm.slane %v988, %v993
        %v996 = vunpack.c.l.s4 1934713408
        %v997 = vunpack.c.0.s8 %v996
        %v998 = vperm.slane %v990, %v997
        %v999 = vrot.slane %v986, 4
        %v1000 = vsel %vm595, %v999, %v980
        %v1001 = vrot.slane %v980, 4
        %v1002 = vsel %vm595, %v986, %v1001
        %v1004 = vunpack.c.l.s4 1934713408
        %v1005 = vunpack.c.0.s8 %v1004
        %v1006 = vperm.slane %v1000, %v1005
        %v1008 = vunpack.c.l.s4 1934713408
        %v1009 = vunpack.c.0.s8 %v1008
        %v1010 = vperm.slane %v1002, %v1009
        %v1011 = vrot.slane %v1006, 4
        %v1012 = vsel %vm595, %v1011, %v994
        %v1013 = vrot.slane %v994, 4
        %v1014 = vsel %vm595, %v1006, %v1013
        %v1015 = vrot.slane %v1010, 4
        %v1016 = vsel %vm595, %v1015, %v998
        %v1017 = vrot.slane %v998, 4
        %v1018 = vsel %vm595, %v1010, %v1017
        %v1019 = vpack.c.bf16 %v698, %v698
        %v1020 = vpack.c.bf16 %v700, %v700
        %v1021 = vpack.c.bf16 %v702, %v702
        %v1022 = vpack.c.bf16 %v704, %v704
        %v1023 = vpack.c.bf16 %v855, %v855
        %v1024 = vpack.c.bf16 %v857, %v857
        %v1025 = vpack.c.bf16 %v859, %v859
        %v1026 = vpack.c.bf16 %v861, %v861
        %vm1027 = vcmask 64512
        %v1029 = vsel %vm1027, %v1019, 0
        %v1032 = vsel %vm1027, %v1023, 0
        %1034 = vmatpush.bf16.xpose.msra.mxu0 0
        %1035 = vmatpush.bf16.xpose.msra.mxu0 0
        %1036 = vmatpush.bf16.xpose.msra.mxu0 0
        %1037 = vmatpush.bf16.xpose.msra.mxu0 0
        %1038 = vmatpush.bf16.xpose.msra.mxu0 0
        %1039 = vmatpush.bf16.xpose.msra.mxu0 0
        %1040 = vmatpush.bf16.xpose.msra.mxu0 0
        %1041 = vmatpush.bf16.xpose.msra.mxu0 %v1032
        %1042 = vmatmul.bf16.gmra.mxu0 %v1029
        %v1043 = vpop.f32.mrf.mxu0
        %v1044 = vadd.f32 0.0, %v1043
        %v1045 = vpop.f32.mrf.mxu0
        %1046 = vdwg.mxu0
        %v1048 = vsel %vm1027, %v1020, 0
        %v1051 = vsel %vm1027, %v1024, 0
        %1053 = vmatpush.bf16.xpose.msra.mxu0 0
        %1054 = vmatpush.bf16.xpose.msra.mxu0 0
        %1055 = vmatpush.bf16.xpose.msra.mxu0 0
        %1056 = vmatpush.bf16.xpose.msra.mxu0 0
        %1057 = vmatpush.bf16.xpose.msra.mxu0 0
        %1058 = vmatpush.bf16.xpose.msra.mxu0 0
        %1059 = vmatpush.bf16.xpose.msra.mxu0 0
        %1060 = vmatpush.bf16.xpose.msra.mxu0 %v1051
        %1061 = vmatmul.bf16.gmra.mxu0 %v1048
        %v1062 = vpop.f32.mrf.mxu0
        %v1063 = vadd.f32 0.0, %v1062
        %v1064 = vpop.f32.mrf.mxu0
        %1065 = vdwg.mxu0
        %v1067 = vsel %vm1027, %v1021, 0
        %v1070 = vsel %vm1027, %v1025, 0
        %1072 = vmatpush.bf16.xpose.msra.mxu0 0
        %1073 = vmatpush.bf16.xpose.msra.mxu0 0
        %1074 = vmatpush.bf16.xpose.msra.mxu0 0
        %1075 = vmatpush.bf16.xpose.msra.mxu0 0
        %1076 = vmatpush.bf16.xpose.msra.mxu0 0
        %1077 = vmatpush.bf16.xpose.msra.mxu0 0
        %1078 = vmatpush.bf16.xpose.msra.mxu0 0
        %1079 = vmatpush.bf16.xpose.msra.mxu0 %v1070
        %1080 = vmatmul.bf16.gmra.mxu0 %v1067
        %v1081 = vpop.f32.mrf.mxu0
        %v1082 = vadd.f32 0.0, %v1081
        %v1083 = vpop.f32.mrf.mxu0
        %1084 = vdwg.mxu0
        %v1086 = vsel %vm1027, %v1022, 0
        %v1089 = vsel %vm1027, %v1026, 0
        %1091 = vmatpush.bf16.xpose.msra.mxu0 0
        %1092 = vmatpush.bf16.xpose.msra.mxu0 0
        %1093 = vmatpush.bf16.xpose.msra.mxu0 0
        %1094 = vmatpush.bf16.xpose.msra.mxu0 0
        %1095 = vmatpush.bf16.xpose.msra.mxu0 0
        %1096 = vmatpush.bf16.xpose.msra.mxu0 0
        %1097 = vmatpush.bf16.xpose.msra.mxu0 0
        %1098 = vmatpush.bf16.xpose.msra.mxu0 %v1089
        %1099 = vmatmul.bf16.gmra.mxu0 %v1086
        %v1100 = vpop.f32.mrf.mxu0
        %v1101 = vadd.f32 0.0, %v1100
        %v1102 = vpop.f32.mrf.mxu0
        %1103 = vdwg.mxu0
        %v1104 = vsel %vm1027, %v1044, -inf
        %1105 = vmax.xlane.f32.xlu0 %v1104
        %v1106 = vpop.xlane.xlu0 %1105
        %v1107 = vsel %vm1027, %v1063, -inf
        %1108 = vmax.xlane.f32.xlu0 %v1107
        %v1109 = vpop.xlane.xlu0 %1108
        %v1110 = vsel %vm1027, %v1082, -inf
        %1111 = vmax.xlane.f32.xlu0 %v1110
        %v1112 = vpop.xlane.xlu0 %1111
        %v1113 = vsel %vm1027, %v1101, -inf
        %1114 = vmax.xlane.f32.xlu0 %v1113
        %v1115 = vpop.xlane.xlu0 %1114
        %v1116 = vsub.f32 %v1044, %v1106
        %v1117 = vsub.f32 %v1063, %v1109
        %v1118 = vsub.f32 %v1082, %v1112
        %v1119 = vsub.f32 %v1101, %v1115
        %v1120 = vmul.f32 %v1116, 1.442695
        %v1121 = vpow.pop %v1120
        %v1122 = vmul.f32 %v1117, 1.442695
        %v1123 = vpow.pop %v1122
        %v1124 = vmul.f32 %v1118, 1.442695
        %v1125 = vpow.pop %v1124
        %v1126 = vmul.f32 %v1119, 1.442695
        %v1127 = vpow.pop %v1126
        %v1128 = vsel %vm1027, %v1121, 0.0
        %1129 = vadd.xlane.f32.xlu0 %v1128
        %v1130 = vpop.xlane.xlu0 %1129
        %v1131 = vsel %vm1027, %v1123, 0.0
        %1132 = vadd.xlane.f32.xlu0 %v1131
        %v1133 = vpop.xlane.xlu0 %1132
        %v1134 = vsel %vm1027, %v1125, 0.0
        %1135 = vadd.xlane.f32.xlu0 %v1134
        %v1136 = vpop.xlane.xlu0 %1135
        %v1137 = vsel %vm1027, %v1127, 0.0
        %1138 = vadd.xlane.f32.xlu0 %v1137
        %v1139 = vpop.xlane.xlu0 %1138
        %v1140 = vrcp.pop %v1130
        %v1141 = vrcp.pop %v1133
        %v1142 = vrcp.pop %v1136
        %v1143 = vrcp.pop %v1139
        %v1144 = vmul.f32 %v1121, %v1140
        %v1145 = vmul.f32 %v1123, %v1141
        %v1146 = vmul.f32 %v1125, %v1142
        %v1147 = vmul.f32 %v1127, %v1143
        %v1148 = vpack.c.bf16 %v1144, %v1144
        %v1149 = vpack.c.bf16 %v1145, %v1145
        %v1150 = vpack.c.bf16 %v1146, %v1146
        %v1151 = vpack.c.bf16 %v1147, %v1147
        %v1152 = vpack.c.bf16 %v1012, %v1012
        %v1153 = vpack.c.bf16 %v1014, %v1014
        %v1154 = vpack.c.bf16 %v1016, %v1016
        %v1155 = vpack.c.bf16 %v1018, %v1018
        %v1157 = vsel %vm1027, %v1148, 0
        %vm1159 = vcmask 1043456
        %v1161 = vsel %vm1159, %v1152, 0
        %1163 = vmatpush.bf16.msra.mxu0 0
        %1164 = vmatpush.bf16.msra.mxu0 0
        %1165 = vmatpush.bf16.msra.mxu0 0
        %1166 = vmatpush.bf16.msra.mxu0 0
        %1167 = vmatpush.bf16.msra.mxu0 0
        %1168 = vmatpush.bf16.msra.mxu0 0
        %1169 = vmatpush.bf16.msra.mxu0 0
        %1170 = vmatpush.bf16.msra.mxu0 %v1161
        %1171 = vmatmul.bf16.gmra.mxu0 %v1157
        %v1172 = vpop.f32.mrf.mxu0
        %v1173 = vadd.f32 0.0, %v1172
        %v1174 = vpop.f32.mrf.mxu0
        %1175 = vdwg.mxu0
        %v1177 = vsel %vm1027, %v1149, 0
        %v1180 = vsel %vm1159, %v1153, 0
        %1182 = vmatpush.bf16.msra.mxu0 0
        %1183 = vmatpush.bf16.msra.mxu0 0
        %1184 = vmatpush.bf16.msra.mxu0 0
        %1185 = vmatpush.bf16.msra.mxu0 0
        %1186 = vmatpush.bf16.msra.mxu0 0
        %1187 = vmatpush.bf16.msra.mxu0 0
        %1188 = vmatpush.bf16.msra.mxu0 0
        %1189 = vmatpush.bf16.msra.mxu0 %v1180
        %1190 = vmatmul.bf16.gmra.mxu0 %v1177
        %v1191 = vpop.f32.mrf.mxu0
        %v1192 = vadd.f32 0.0, %v1191
        %v1193 = vpop.f32.mrf.mxu0
        %1194 = vdwg.mxu0
        %v1196 = vsel %vm1027, %v1150, 0
        %v1199 = vsel %vm1159, %v1154, 0
        %1201 = vmatpush.bf16.msra.mxu0 0
        %1202 = vmatpush.bf16.msra.mxu0 0
        %1203 = vmatpush.bf16.msra.mxu0 0
        %1204 = vmatpush.bf16.msra.mxu0 0
        %1205 = vmatpush.bf16.msra.mxu0 0
        %1206 = vmatpush.bf16.msra.mxu0 0
        %1207 = vmatpush.bf16.msra.mxu0 0
        %1208 = vmatpush.bf16.msra.mxu0 %v1199
        %1209 = vmatmul.bf16.gmra.mxu0 %v1196
        %v1210 = vpop.f32.mrf.mxu0
        %v1211 = vadd.f32 0.0, %v1210
        %v1212 = vpop.f32.mrf.mxu0
        %1213 = vdwg.mxu0
        %v1215 = vsel %vm1027, %v1151, 0
        %v1218 = vsel %vm1159, %v1155, 0
        %1220 = vmatpush.bf16.msra.mxu0 0
        %1221 = vmatpush.bf16.msra.mxu0 0
        %1222 = vmatpush.bf16.msra.mxu0 0
        %1223 = vmatpush.bf16.msra.mxu0 0
        %1224 = vmatpush.bf16.msra.mxu0 0
        %1225 = vmatpush.bf16.msra.mxu0 0
        %1226 = vmatpush.bf16.msra.mxu0 0
        %1227 = vmatpush.bf16.msra.mxu0 %v1218
        %1228 = vmatmul.bf16.gmra.mxu0 %v1215
        %v1229 = vpop.f32.mrf.mxu0
        %v1230 = vadd.f32 0.0, %v1229
        %v1231 = vpop.f32.mrf.mxu0
        %1232 = vdwg.mxu0
        %v1233 = vrot.slane %v1211, 4
        %v1234 = vsel %vm595, %v1233, %v1173
        %v1235 = vrot.slane %v1173, 4
        %v1236 = vsel %vm595, %v1211, %v1235
        %v1238 = vunpack.c.l.s4 1983009808
        %v1239 = vunpack.c.0.s8 %v1238
        %v1240 = vperm.slane %v1234, %v1239
        %v1242 = vunpack.c.l.s4 1983009808
        %v1243 = vunpack.c.0.s8 %v1242
        %v1244 = vperm.slane %v1236, %v1243
        %v1245 = vrot.slane %v1230, 4
        %v1246 = vsel %vm595, %v1245, %v1192
        %v1247 = vrot.slane %v1192, 4
        %v1248 = vsel %vm595, %v1230, %v1247
        %v1250 = vunpack.c.l.s4 1983009808
        %v1251 = vunpack.c.0.s8 %v1250
        %v1252 = vperm.slane %v1246, %v1251
        %v1254 = vunpack.c.l.s4 1983009808
        %v1255 = vunpack.c.0.s8 %v1254
        %v1256 = vperm.slane %v1248, %v1255
        %v1257 = vrot.slane %v1252, 4
        %v1258 = vsel %vm595, %v1257, %v1240
        %v1259 = vrot.slane %v1240, 4
        %v1260 = vsel %vm595, %v1252, %v1259
        %v1262 = vunpack.c.l.s4 1934713408
        %v1263 = vunpack.c.0.s8 %v1262
        %v1264 = vperm.slane %v1258, %v1263
        %v1266 = vunpack.c.l.s4 1934713408
        %v1267 = vunpack.c.0.s8 %v1266
        %v1268 = vperm.slane %v1260, %v1267
        %v1269 = vrot.slane %v1256, 4
        %v1270 = vsel %vm595, %v1269, %v1244
        %v1271 = vrot.slane %v1244, 4
        %v1272 = vsel %vm595, %v1256, %v1271
        %v1274 = vunpack.c.l.s4 1934713408
        %v1275 = vunpack.c.0.s8 %v1274
        %v1276 = vperm.slane %v1270, %v1275
        %v1278 = vunpack.c.l.s4 1934713408
        %v1279 = vunpack.c.0.s8 %v1278
        %v1280 = vperm.slane %v1272, %v1279
        %v1281 = vrot.slane %v1264, 4
        %v1282 = vsel %vm595, 0.0, %v1281
        %v1283 = vrot.slane %v1268, 4
        %v1284 = vsel %vm595, 0.0, %v1283
        %v1285 = vrot.slane %v1276, 4
        %v1286 = vsel %vm595, 0.0, %v1285
        %v1287 = vrot.slane %v1280, 4
        %v1288 = vsel %vm595, 0.0, %v1287
        %v1289 = vsel %vm595, %v1283, %v1264
        %v1291 = vunpack.c.l.s4 1983009808
        %v1292 = vunpack.c.0.s8 %v1291
        %v1293 = vperm.slane %v1289, %v1292
        %v1294 = vrot.slane %v1284, 4
        %v1295 = vsel %vm595, %v1294, %v1282
        %v1297 = vunpack.c.l.s4 1983009808
        %v1298 = vunpack.c.0.s8 %v1297
        %v1299 = vperm.slane %v1295, %v1298
        %v1300 = vsel %vm595, %v1287, %v1276
        %v1302 = vunpack.c.l.s4 1983009808
        %v1303 = vunpack.c.0.s8 %v1302
        %v1304 = vperm.slane %v1300, %v1303
        %v1305 = vrot.slane %v1288, 4
        %v1306 = vsel %vm595, %v1305, %v1286
        %v1308 = vunpack.c.l.s4 1983009808
        %v1309 = vunpack.c.0.s8 %v1308
        %v1310 = vperm.slane %v1306, %v1309
        %v1311 = vrot.slane %v1299, 4
        %v1312 = vsel %vm595, %v1311, %v1293
        %v1313 = vrot.slane %v1293, 4
        %v1314 = vsel %vm595, %v1299, %v1313
        %v1316 = vunpack.c.l.s4 1934713408
        %v1317 = vunpack.c.0.s8 %v1316
        %v1318 = vperm.slane %v1312, %v1317
        %v1320 = vunpack.c.l.s4 1934713408
        %v1321 = vunpack.c.0.s8 %v1320
        %v1322 = vperm.slane %v1314, %v1321
        %v1323 = vrot.slane %v1310, 4
        %v1324 = vsel %vm595, %v1323, %v1304
        %v1325 = vrot.slane %v1304, 4
        %v1326 = vsel %vm595, %v1310, %v1325
        %v1328 = vunpack.c.l.s4 1934713408
        %v1329 = vunpack.c.0.s8 %v1328
        %v1330 = vperm.slane %v1324, %v1329
        %v1332 = vunpack.c.l.s4 1934713408
        %v1333 = vunpack.c.0.s8 %v1332
        %v1334 = vperm.slane %v1326, %v1333
        %v1335 = vrot.slane %v1330, 4
        %v1336 = vsel %vm595, %v1335, %v1318
        %v1337 = vrot.slane %v1318, 4
        %v1338 = vsel %vm595, %v1330, %v1337
        %v1339 = vrot.slane %v1334, 4
        %v1340 = vsel %vm595, %v1339, %v1322
        %v1341 = vrot.slane %v1322, 4
        %v1342 = vsel %vm595, %v1334, %v1341
        %1344 = vrot.lane.b32.xlu0 %v1338, 8
        %v1345 = vpop.permute.xlu0 %1344
        %1348 = vrot.lane.b32.xlu0 %v1340, 16
        %v1349 = vpop.permute.xlu0 %1348
        %1352 = vrot.lane.b32.xlu0 %v1342, 24
        %v1353 = vpop.permute.xlu0 %1352
        %v1355 = vsel %vm1027, %v1336, %v1345
        %vm1356 = vcmask 130048
        %v1357 = vsel %vm1356, %v1355, %v1349
        %vm1358 = vcmask 195584
        %v1359 = vsel %vm1358, %v1357, %v1353
        %v1360 = vpack.c.bf16 %v1359, %v1359
        %v1361 = vld [vmem:[#allocation13] sm:$0xf]
        %v1362 = vld [vmem:[#allocation13 + $0x4] sm:$0xf]
        %v1363 = vld [vmem:[#allocation13 + $0x8] sm:$0xf]
        %v1364 = vld [vmem:[#allocation13 + $0xc] sm:$0xf]
        %v1365 = vld [vmem:[%s10] sm:$0x1]
        %v1367 = vperm.slane %v1365, 0
        %v1373 = vunpack.c.l.b16 %v1361
        %v1374 = vunpack.c.l.b16 %v1362
        %v1375 = vunpack.c.l.b16 %v1363
        %v1376 = vunpack.c.l.b16 %v1364
        %v1377 = vpack.c.b16 %v1374, %v1373
        %v1378 = vpack.c.b16 %v1376, %v1375
        %v1382 = vsel %vm567, %v1360, 0
        %1384 = vmatpush.bf16.msra.mxu0 0
        %1385 = vmatpush.bf16.msra.mxu0 0
        %1386 = vmatpush.bf16.msra.mxu0 0
        %1387 = vmatpush.bf16.msra.mxu0 0
        %1388 = vmatpush.bf16.msra.mxu0 0
        %1389 = vmatpush.bf16.msra.mxu0 0
        %1390 = vmatpush.bf16.msra.mxu0 %v1378
        %1391 = vmatpush.bf16.msra.mxu0 %v1377
        %1392 = vmatmul.bf16.gmra.mxu0 %v1382
        %v1393 = vpop.f32.mrf.mxu0
        %v1394 = vadd.f32 %v1367, %v1393
        %v1395 = vpop.f32.mrf.mxu0
        %1396 = vdwg.mxu0
        %1397 = vst.msk [vmem:[%s544] sm:$0xff] %vm567, %v1394
        %s1398 = sand.u32 %s287, 1
        %s1399 = scalar_lea.sflag [#allocation4], %s1398
        %s1400 = sand.u32 %s287, 1
        %s1401 = smul.addr %s1400, 8
        %s1402 = scalar_lea.vmem [#allocation14], %s1401
        // Predicated region
        $region93: #{tpu_custom_call.1} parent=63 // pred_check
          %p1403 = pneg %p297
        $region94: #{tpu_custom_call.1} parent=63 // pred_check_branch
          %1405 = sbr.rel (%p1403) target = $region96
        $region95: #{tpu_custom_call.1} parent=63 // pred_region
          %1407 = vsyncadd %s1399, 0
          %s1408 = smul.addr %s33, 8
          %s1409 = scalar_lea.hbm %s11, %s1408
          %s1411 = sshll.u32 %s1402, 4
          %s1412 = int_to_ptr.vmem [resolvable:$true] %s1411
          %s1413 = sshll.u32 %s1409, 4
          %s1414 = int_to_ptr.hbm [resolvable:$true] %s1413
          %1416 = dma.vmem_to_hbm [thread:$0]  %s1412, 128, %s1414, %s1399
        $region96: #{tpu_custom_call.1} parent=63 // pred_fallthru
          _
      $region64: #{tpu_custom_call.1} parent=5 // pred_fallthru
        _
      %p1417 = scmp.le.s32.totalorder 2, %s28
      // Predicated region
      $region97: #{tpu_custom_call.1} parent=5 // pred_check
        %p1418 = pneg %p1417
      $region98: #{tpu_custom_call.1} parent=5 // pred_check_branch
        %1420 = sbr.rel (%p1418) target = $region100
      $region99: #{tpu_custom_call.1} parent=5 // pred_region
        %s1421 = ssub.s32 %s28, 2
        // Predicated region
        $region101: #{tpu_custom_call.1} parent=99 // pred_check
          %p1422 = pneg %p303
        $region102: #{tpu_custom_call.1} parent=99 // pred_check_branch
          %1424 = sbr.rel (%p1422) target = $region104
        $region103: #{tpu_custom_call.1} parent=99 // pred_region
          %s1425 = sand.u32 %s288, 1
          %s1426 = scalar_lea.sflag [#allocation4], %s1425
          %s1427 = sand.u32 %s288, 1
          %s1428 = smul.addr %s1427, 8
          %s1429 = scalar_lea.vmem [#allocation14], %s1428
          %1431 = dma.done %s1426, 128
        $region104: #{tpu_custom_call.1} parent=99 // pred_fallthru
          _
      $region100: #{tpu_custom_call.1} parent=5 // pred_fallthru
        _
    $region6: #{tpu_custom_call.1} parent=1 // loop_footer
      %s32 = sadd.s32 1, %s28
    $region7: #{tpu_custom_call.1} parent=1 // loop_footer_branch
      %27 = sbr.rel target = $region3
    $region8: #{tpu_custom_call.1} parent=1 // loop_exit
      _
    %1432 = vsyncpa [#allocation3], 1
    %s1433 = scalar_lea.sflag [#allocation3], 1
    %1434 = vsyncpa %s1433, 1
    %1435 = vsyncpa [#allocation6], 1
    %s1436 = scalar_lea.sflag [#allocation6], 1
    %1437 = vsyncpa %s1436, 1
    %1438 = vsyncpa [#allocation9], 1
    %1439 = vsyncpa [#allocation12], 1
    %1440 = vsyncpa [#allocation4], 1
    %s1441 = scalar_lea.sflag [#allocation4], 1
    %1442 = vsyncpa %s1441, 1

</llo_original>
